<compile_context>
chip_gen: v7x
topology: tpu7x:2x2x1
jax: 0.10.0
libtpu: 0.0.40
codegen_flags: <defaults>
</compile_context>

<pallas_src>
import functools

import jax
import jax.numpy as jnp
from jax.experimental import pallas as pl
from jax.experimental.pallas import tpu as pltpu

LANE = 128          # lane width: all layer output widths are padded to a multiple
_TB_TARGET = 256    # preferred batch tile (multiple of 8 sublanes)


def _round_up(n, m):
    return ((n + m - 1) // m) * m


def _pick_tile(batch, target=_TB_TARGET):
    """Largest batch tile <= target that is a multiple of 8 and divides batch."""
    if batch <= target:
        return batch                      # single block == full dim (always legal)
    tb = (target // 8) * 8
    while tb >= 8:
        if batch % tb == 0:
            return tb
        tb -= 8
    return batch                          # fall back: one big block


def _mlp_kernel(*refs, num_layers):
    """Fused MLP forward on one batch tile.

    refs = (x_ref, w0, b0, w1, b1, ..., o_ref)
      x_ref : [TB, IN]          f32
      wi    : [INp_i, OUTp_i]   bf16 (pre-transposed, zero-padded to 128 multiples)
      bi    : [1, OUTp_i]       f32  (zero-padded)
      o_ref : [TB, LANE]        f32  (only column 0 is meaningful)
    All intermediate activations live in VMEM/vregs; weights are resident
    across every grid step (constant index_map), nothing touches HBM between
    layers.
    """
    x_ref, o_ref, wb = refs[0], refs[-1], refs[1:-1]
    y = x_ref[...]                                        # f32 activations
    for li in range(num_layers):
        w = wb[2 * li][...]                               # bf16 [INp, OUTp]
        b = wb[2 * li + 1][...]                           # f32  [1, OUTp]
        y = jnp.dot(y.astype(w.dtype), w,
                    preferred_element_type=jnp.float32) + b
        if li < num_layers - 1:
            # Plain sigmoid in f32: exp(-y) may overflow to +inf for very
            # negative y, but 1/(1+inf) == 0 is still correct -> no NaN, and
            # half the per-element VALU work of the abs/where variant.
            y = 1.0 / (1.0 + jnp.exp(-y))
    o_ref[...] = y.astype(o_ref.dtype)


def _vmem_limit_bytes(flat_params, tb, in_dim, out_pad):
    # Resident weights/biases + double-buffered x/out tiles, 4x headroom for
    # compiler scratch, capped at 48 MiB (legal on v7x's 64 MiB physical VMEM).
    w_bytes = sum(int(p.size) * p.dtype.itemsize for p in flat_params)
    io_bytes = 2 * tb * in_dim * 4 + 2 * tb * out_pad * 4
    need = w_bytes + io_bytes
    return int(min(max(4 * need, 32 << 20), 48 << 20))


def _mlp_forward(x, flat_params, *, tb):
    """x: [B, IN] f32; flat_params: (w0_t, b0, ..., wL_t, bL), all lane-padded."""
    num_layers = len(flat_params) // 2
    B, in_dim = x.shape
    out_pad = flat_params[-1].shape[-1]            # LANE-padded output width

    grid = (pl.cdiv(B, tb),)
    in_specs = [pl.BlockSpec((tb, in_dim), lambda i: (i, 0))]
    for p in flat_params:
        # Full-array block + constant index_map -> DMA'd once, then resident
        # in VMEM for every batch-grid step.
        in_specs.append(pl.BlockSpec(p.shape, lambda i: (0, 0)))
    out_specs = pl.BlockSpec((tb, out_pad), lambda i: (i, 0))

    kernel = functools.partial(_mlp_kernel, num_layers=num_layers)
    out_padded = pl.pallas_call(
        kernel,
        out_shape=jax.ShapeDtypeStruct((B, out_pad), jnp.float32),
        grid=grid,
        in_specs=in_specs,
        out_specs=out_specs,
        compiler_params=pltpu.CompilerParams(
            # batch tiles are independent -> shard across both TCs on v7x
            dimension_semantics=("parallel",),
            vmem_limit_bytes=_vmem_limit_bytes(flat_params, tb, in_dim, out_pad),
        ),
    )(x, *flat_params)
    # TODO(synk): at very large batch, benchmark a (TB, 1) masked-store output
    # against this 128-wide padded slab (128x less HBM write traffic).
    return out_padded[:, :1]


class MLPPallas:
    """JAX/Pallas re-implementation of the PyTorch MLP module's forward pass."""

    def __init__(self, input_size, hidden_sizes, key):
        # Reference params in PyTorch nn.Linear convention: W [out, in], b [out].
        self.params = []
        in_features = input_size
        dims = list(hidden_sizes) + [1]
        for out_features in dims:
            key, kw, kb = jax.random.split(key, 3)
            bound = 1.0 / (in_features ** 0.5)
            W = jax.random.uniform(
                kw, (out_features, in_features), jnp.float32, -bound, bound
            )
            b = jax.random.uniform(kb, (out_features,), jnp.float32, -bound, bound)
            self.params.append((W, b))
            in_features = out_features

        # Kernel-facing params, prepared ONCE at init:
        #  * weights transposed to [in, out] and cast to bf16 (MXU-native),
        #  * biases kept f32 (added to the f32 accumulator), reshaped [1, out],
        #  * every layer's OUT zero-padded to a multiple of 128 lanes and the
        #    NEXT layer's extra input rows zeroed, so the padded
        #    "sigmoid(0) = 0.5" columns contribute exactly nothing.
        flat = []
        prev_pad = input_size                  # the network input is not padded
        for W, b in self.params:
            out, inp = W.shape
            out_pad = _round_up(out, LANE)
            w_t = jnp.pad(W.T, ((0, prev_pad - inp), (0, out_pad - out)))
            b2 = jnp.pad(b.reshape(1, -1), ((0, 0), (0, out_pad - out)))
            flat.append(w_t.astype(jnp.bfloat16))
            flat.append(b2.astype(jnp.float32))
            prev_pad = out_pad
        self.flat_params = tuple(flat)

        # Single jitted dispatch; tile size is a static argument chosen per batch.
        self._forward = jax.jit(_mlp_forward, static_argnames=("tb",))

    def __call__(self, x):
        tb = _pick_tile(x.shape[0])
        return self._forward(x, self.flat_params, tb=tb)


if __name__ == "__main__":
    key = jax.random.PRNGKey(0)
    key, kx, kp = jax.random.split(key, 3)

    batch = 512              # exercises the batch grid (2 tiles of 256 rows)
    input_size = 16
    hidden_sizes = [32, 32]

    x = jax.random.normal(kx, (batch, input_size), jnp.float32)
    model = MLPPallas(input_size, hidden_sizes, kp)

    out = jax.block_until_ready(model(x))

    # Plain-JAX f32 reference (same params, PyTorch convention).
    ref = x
    for W, b in model.params[:-1]:
        ref = jax.nn.sigmoid(ref @ W.T + b)
    W, b = model.params[-1]
    ref = ref @ W.T + b

    assert out.shape == (batch, 1)
    # The kernel feeds the MXU bf16 weights/activations (f32 accumulation),
    # so compare against the f32 reference with a bf16-appropriate tolerance.
    err = float(jnp.max(jnp.abs(out - ref)))
    assert jnp.allclose(out, ref, atol=3e-2, rtol=3e-2), f"max abs err = {err}"

    print("KERNEL_OK")
</pallas_src>

<mosaic_0001>
module attributes {stable_mosaic.version = 11 : i64} {
  func.func @_mlp_kernel(%arg0: i32, %arg1: memref<256x16xf32, #tpu.memory_space<vmem>>, %arg2: memref<16x128xbf16, #tpu.memory_space<vmem>>, %arg3: memref<1x128xf32, #tpu.memory_space<vmem>>, %arg4: memref<128x128xbf16, #tpu.memory_space<vmem>>, %arg5: memref<1x128xf32, #tpu.memory_space<vmem>>, %arg6: memref<128x128xbf16, #tpu.memory_space<vmem>>, %arg7: memref<1x128xf32, #tpu.memory_space<vmem>>, %arg8: memref<256x128xf32, #tpu.memory_space<vmem>>) attributes {dimension_semantics = [#tpu.dimension_semantics<parallel>], iteration_bounds = array<i64: 2>, scalar_prefetch = 0 : i64, scratch_operands = 0 : i64, tpu.core_type = #tpu.core_type<tc>, window_params = [{transform_indices = @transform_0, window_bounds = array<i64: 256, 16>}, {pipeline_mode = #tpu.pipeline_mode<synchronous>, transform_indices = @transform_1, window_bounds = array<i64: 16, 128>}, {pipeline_mode = #tpu.pipeline_mode<synchronous>, transform_indices = @transform_2, window_bounds = array<i64: 1, 128>}, {pipeline_mode = #tpu.pipeline_mode<synchronous>, transform_indices = @transform_3, window_bounds = array<i64: 128, 128>}, {pipeline_mode = #tpu.pipeline_mode<synchronous>, transform_indices = @transform_4, window_bounds = array<i64: 1, 128>}, {pipeline_mode = #tpu.pipeline_mode<synchronous>, transform_indices = @transform_5, window_bounds = array<i64: 128, 128>}, {pipeline_mode = #tpu.pipeline_mode<synchronous>, transform_indices = @transform_6, window_bounds = array<i64: 1, 128>}, {transform_indices = @transform_7, window_bounds = array<i64: 256, 128>}]} {
    %c0 = arith.constant 0 : index
    %c0_0 = arith.constant 0 : index
    %0 = vector.load %arg1[%c0, %c0_0] : memref<256x16xf32, #tpu.memory_space<vmem>>, vector<256x16xf32>
    %c0_1 = arith.constant 0 : index
    %c0_2 = arith.constant 0 : index
    %1 = vector.load %arg2[%c0_1, %c0_2] : memref<16x128xbf16, #tpu.memory_space<vmem>>, vector<16x128xbf16>
    %c0_3 = arith.constant 0 : index
    %c0_4 = arith.constant 0 : index
    %2 = vector.load %arg3[%c0_3, %c0_4] : memref<1x128xf32, #tpu.memory_space<vmem>>, vector<1x128xf32>
    %3 = arith.truncf %0 : vector<256x16xf32> to vector<256x16xbf16>
    %cst = arith.constant dense<0.000000e+00> : vector<256x128xf32>
    %4 = tpu.matmul %3, %1, %cst {dimension_numbers = #tpu.dot_dimension_numbers<[1], [0], [0], [1], [0, 0, 1, 1], [], []>} : vector<256x16xbf16>, vector<16x128xbf16>, vector<256x128xf32> -> vector<256x128xf32>
    %5 = vector.broadcast %2 : vector<1x128xf32> to vector<256x128xf32>
    %6 = arith.addf %4, %5 : vector<256x128xf32>
    %cst_5 = arith.constant 0.000000e+00 : f32
    %7 = vector.broadcast %cst_5 : f32 to vector<256x128xf32>
    %8 = arith.subf %7, %6 : vector<256x128xf32>
    %9 = math.exp %8 : vector<256x128xf32>
    %cst_6 = arith.constant 1.000000e+00 : f32
    %10 = vector.broadcast %cst_6 : f32 to vector<256x128xf32>
    %11 = arith.addf %10, %9 : vector<256x128xf32>
    %cst_7 = arith.constant 1.000000e+00 : f32
    %12 = vector.broadcast %cst_7 : f32 to vector<256x128xf32>
    %13 = arith.divf %12, %11 : vector<256x128xf32>
    %c0_8 = arith.constant 0 : index
    %c0_9 = arith.constant 0 : index
    %14 = vector.load %arg4[%c0_8, %c0_9] : memref<128x128xbf16, #tpu.memory_space<vmem>>, vector<128x128xbf16>
    %c0_10 = arith.constant 0 : index
    %c0_11 = arith.constant 0 : index
    %15 = vector.load %arg5[%c0_10, %c0_11] : memref<1x128xf32, #tpu.memory_space<vmem>>, vector<1x128xf32>
    %16 = arith.truncf %13 : vector<256x128xf32> to vector<256x128xbf16>
    %cst_12 = arith.constant dense<0.000000e+00> : vector<256x128xf32>
    %17 = tpu.matmul %16, %14, %cst_12 {dimension_numbers = #tpu.dot_dimension_numbers<[1], [0], [0], [1], [0, 0, 1, 1], [], []>} : vector<256x128xbf16>, vector<128x128xbf16>, vector<256x128xf32> -> vector<256x128xf32>
    %18 = vector.broadcast %15 : vector<1x128xf32> to vector<256x128xf32>
    %19 = arith.addf %17, %18 : vector<256x128xf32>
    %cst_13 = arith.constant 0.000000e+00 : f32
    %20 = vector.broadcast %cst_13 : f32 to vector<256x128xf32>
    %21 = arith.subf %20, %19 : vector<256x128xf32>
    %22 = math.exp %21 : vector<256x128xf32>
    %cst_14 = arith.constant 1.000000e+00 : f32
    %23 = vector.broadcast %cst_14 : f32 to vector<256x128xf32>
    %24 = arith.addf %23, %22 : vector<256x128xf32>
    %cst_15 = arith.constant 1.000000e+00 : f32
    %25 = vector.broadcast %cst_15 : f32 to vector<256x128xf32>
    %26 = arith.divf %25, %24 : vector<256x128xf32>
    %c0_16 = arith.constant 0 : index
    %c0_17 = arith.constant 0 : index
    %27 = vector.load %arg6[%c0_16, %c0_17] : memref<128x128xbf16, #tpu.memory_space<vmem>>, vector<128x128xbf16>
    %c0_18 = arith.constant 0 : index
    %c0_19 = arith.constant 0 : index
    %28 = vector.load %arg7[%c0_18, %c0_19] : memref<1x128xf32, #tpu.memory_space<vmem>>, vector<1x128xf32>
    %29 = arith.truncf %26 : vector<256x128xf32> to vector<256x128xbf16>
    %cst_20 = arith.constant dense<0.000000e+00> : vector<256x128xf32>
    %30 = tpu.matmul %29, %27, %cst_20 {dimension_numbers = #tpu.dot_dimension_numbers<[1], [0], [0], [1], [0, 0, 1, 1], [], []>} : vector<256x128xbf16>, vector<128x128xbf16>, vector<256x128xf32> -> vector<256x128xf32>
    %31 = vector.broadcast %28 : vector<1x128xf32> to vector<256x128xf32>
    %32 = arith.addf %30, %31 : vector<256x128xf32>
    %c0_21 = arith.constant 0 : index
    %c0_22 = arith.constant 0 : index
    %33 = vector.load %arg8[%c0_21, %c0_22] : memref<256x128xf32, #tpu.memory_space<vmem>>, vector<256x128xf32>
    tpu.vector_store %arg8[%c0_21, %c0_22], %32 {strides = array<i32>} : memref<256x128xf32, #tpu.memory_space<vmem>>, vector<256x128xf32>,
    return
  }
  func.func @transform_0(%arg0: i32) -> (i32, i32) {
    %c0_i32 = arith.constant 0 : i32
    %c0_i32_0 = arith.constant 0 : i32
    return %arg0, %c0_i32 : i32, i32
  }
  func.func @transform_1(%arg0: i32) -> (i32, i32) {
    %c0_i32 = arith.constant 0 : i32
    %c0_i32_0 = arith.constant 0 : i32
    %c0_i32_1 = arith.constant 0 : i32
    return %c0_i32, %c0_i32_0 : i32, i32
  }
  func.func @transform_2(%arg0: i32) -> (i32, i32) {
    %c0_i32 = arith.constant 0 : i32
    %c0_i32_0 = arith.constant 0 : i32
    %c0_i32_1 = arith.constant 0 : i32
    return %c0_i32, %c0_i32_0 : i32, i32
  }
  func.func @transform_3(%arg0: i32) -> (i32, i32) {
    %c0_i32 = arith.constant 0 : i32
    %c0_i32_0 = arith.constant 0 : i32
    %c0_i32_1 = arith.constant 0 : i32
    return %c0_i32, %c0_i32_0 : i32, i32
  }
  func.func @transform_4(%arg0: i32) -> (i32, i32) {
    %c0_i32 = arith.constant 0 : i32
    %c0_i32_0 = arith.constant 0 : i32
    %c0_i32_1 = arith.constant 0 : i32
    return %c0_i32, %c0_i32_0 : i32, i32
  }
  func.func @transform_5(%arg0: i32) -> (i32, i32) {
    %c0_i32 = arith.constant 0 : i32
    %c0_i32_0 = arith.constant 0 : i32
    %c0_i32_1 = arith.constant 0 : i32
    return %c0_i32, %c0_i32_0 : i32, i32
  }
  func.func @transform_6(%arg0: i32) -> (i32, i32) {
    %c0_i32 = arith.constant 0 : i32
    %c0_i32_0 = arith.constant 0 : i32
    %c0_i32_1 = arith.constant 0 : i32
    return %c0_i32, %c0_i32_0 : i32, i32
  }
  func.func @transform_7(%arg0: i32) -> (i32, i32) {
    %c0_i32 = arith.constant 0 : i32
    %c0_i32_0 = arith.constant 0 : i32
    return %arg0, %c0_i32 : i32, i32
  }
}

</mosaic_0001>

<llo_original>
// kernel: _mlp_forward.1
$region0: #{_mlp_forward.1}
  #allocation0 [shape = 'u32[]', space=smem, size = 0x4, offset = 0x4, fixed_abs, tag = 'smem constant byte address 0x4 - core index']
  #allocation1 [shape = 'u32[144,128]{1,0:T(1,128)}', space=vmem, size = 0x12000, scoped, tag = 'internal scratch']
  %s0 = inlined_call_operand.vmem [shape: f32[512,16], index: 0, kind: input, shape index: {}]
  %s1 = inlined_call_operand.vmem [shape: bf16[16,128], index: 1, kind: input, shape index: {}]
  %s2 = inlined_call_operand.vmem [shape: f32[1,128], index: 2, kind: input, shape index: {}]
  %s3 = inlined_call_operand.vmem [shape: bf16[128,128], index: 3, kind: input, shape index: {}]
  %s4 = inlined_call_operand.vmem [shape: f32[1,128], index: 4, kind: input, shape index: {}]
  %s5 = inlined_call_operand.vmem [shape: bf16[128,128], index: 5, kind: input, shape index: {}]
  %s6 = inlined_call_operand.vmem [shape: f32[1,128], index: 6, kind: input, shape index: {}]
  %s7 = inlined_call_operand.vmem [shape: f32[512,128], index: 7, kind: output, shape index: {}]
  %s8 = sld [smem:[#allocation0]]
  $region61: #{_mlp_forward.1} parent=0
    _
  %s10 = ssub.s32 1, %s8
  %s11 = scalar_select 0, %s10, %s8
  loop: start=0, step=1, limit=4
  $region2: #{_mlp_forward.1} parent=0 // loop_pre_header
    _
  $region3: #{_mlp_forward.1} parent=0 // loop_header
    %s13 = sphi 0, %s17
    %p14 = scmp.ge.s32.totalorder %s13, 4
    %s23 = sphi 0, %s25
    %s26 = sphi 0, %s23
    %s27 = sphi 0, %s26
    %s43 = sphi 0, %s27
    %s47 = sphi 0, %s47
    %s49 = sphi 0, %s47
    %s50 = sphi 0, %s49
    %s64 = sphi 0, %s50
    %s68 = sphi 0, %s68
    %s70 = sphi 0, %s68
    %s71 = sphi 0, %s70
    %s85 = sphi 0, %s71
    %s89 = sphi 0, %s89
    %s91 = sphi 0, %s89
    %s92 = sphi 0, %s91
    %s106 = sphi 0, %s92
    %s110 = sphi 0, %s110
    %s112 = sphi 0, %s110
    %s113 = sphi 0, %s112
    %s127 = sphi 0, %s113
    %s131 = sphi 0, %s131
    %s133 = sphi 0, %s131
    %s134 = sphi 0, %s133
    %s148 = sphi 0, %s134
    %s152 = sphi 0, %s152
    %s154 = sphi 0, %s152
    %s155 = sphi 0, %s154
    %s169 = sphi 0, %s155
    %s175 = sphi 0, %s177
    %s178 = sphi 0, %s175
    %s179 = sphi 0, %s178
    %s195 = sphi 0, %s179
  $region4: #{_mlp_forward.1} parent=0 // loop_header_branch
    %16 = sbr.rel (%p14) target = $region8
  $region5: #{_mlp_forward.1} parent=0 // loop_body
    %s18 = ssub.s32 %s13, 1
    %s19 = ssub.s32 %s13, 2
    %s20 = sadd.s32 %s13, 1
    %s21 = ssub.s32 %s13, %s20
    %p22 = scmp.eq.s32.totalorder %s21, 0
    %s24 = sadd.s32 %s23, 1
    %s25 = scalar_select %p22, %s23, %s24
    %p28 = pneg %p22
    %p29 = scmp.eq.s32.totalorder %s13, 1
    %p30 = por %p28, %p29
    %p31 = scmp.ne.s32.totalorder %s23, %s26
    %p32 = scmp.eq.s32.totalorder %s13, 0
    %p33 = por %p31, %p32
    %p34 = scmp.ne.s32.totalorder %s23, %s26
    %p35 = scmp.eq.s32.totalorder %s18, 1
    %p36 = por %p34, %p35
    %p37 = scmp.ne.s32.totalorder %s26, %s27
    %p38 = scmp.eq.s32.totalorder %s18, 0
    %p39 = por %p37, %p38
    %p40 = scmp.ne.s32.totalorder %s26, %s27
    %p41 = scmp.eq.s32.totalorder %s19, 1
    %p42 = por %p40, %p41
    %p44 = scmp.ne.s32.totalorder %s27, %s43
    %p45 = scmp.eq.s32.totalorder %s19, 0
    %p46 = por %p44, %p45
    %s48 = sadd.s32 %s47, 1
    %p51 = scmp.eq.s32.totalorder %s13, 1
    %p52 = scmp.ne.s32.totalorder %s47, %s49
    %p53 = scmp.eq.s32.totalorder %s13, 0
    %p54 = por %p52, %p53
    %p55 = scmp.ne.s32.totalorder %s47, %s49
    %p56 = scmp.eq.s32.totalorder %s18, 1
    %p57 = por %p55, %p56
    %p58 = scmp.ne.s32.totalorder %s49, %s50
    %p59 = scmp.eq.s32.totalorder %s18, 0
    %p60 = por %p58, %p59
    %p61 = scmp.ne.s32.totalorder %s49, %s50
    %p62 = scmp.eq.s32.totalorder %s19, 1
    %p63 = por %p61, %p62
    %p65 = scmp.ne.s32.totalorder %s50, %s64
    %p66 = scmp.eq.s32.totalorder %s19, 0
    %p67 = por %p65, %p66
    %s69 = sadd.s32 %s68, 1
    %p72 = scmp.eq.s32.totalorder %s13, 1
    %p73 = scmp.ne.s32.totalorder %s68, %s70
    %p74 = scmp.eq.s32.totalorder %s13, 0
    %p75 = por %p73, %p74
    %p76 = scmp.ne.s32.totalorder %s68, %s70
    %p77 = scmp.eq.s32.totalorder %s18, 1
    %p78 = por %p76, %p77
    %p79 = scmp.ne.s32.totalorder %s70, %s71
    %p80 = scmp.eq.s32.totalorder %s18, 0
    %p81 = por %p79, %p80
    %p82 = scmp.ne.s32.totalorder %s70, %s71
    %p83 = scmp.eq.s32.totalorder %s19, 1
    %p84 = por %p82, %p83
    %p86 = scmp.ne.s32.totalorder %s71, %s85
    %p87 = scmp.eq.s32.totalorder %s19, 0
    %p88 = por %p86, %p87
    %s90 = sadd.s32 %s89, 1
    %p93 = scmp.eq.s32.totalorder %s13, 1
    %p94 = scmp.ne.s32.totalorder %s89, %s91
    %p95 = scmp.eq.s32.totalorder %s13, 0
    %p96 = por %p94, %p95
    %p97 = scmp.ne.s32.totalorder %s89, %s91
    %p98 = scmp.eq.s32.totalorder %s18, 1
    %p99 = por %p97, %p98
    %p100 = scmp.ne.s32.totalorder %s91, %s92
    %p101 = scmp.eq.s32.totalorder %s18, 0
    %p102 = por %p100, %p101
    %p103 = scmp.ne.s32.totalorder %s91, %s92
    %p104 = scmp.eq.s32.totalorder %s19, 1
    %p105 = por %p103, %p104
    %p107 = scmp.ne.s32.totalorder %s92, %s106
    %p108 = scmp.eq.s32.totalorder %s19, 0
    %p109 = por %p107, %p108
    %s111 = sadd.s32 %s110, 1
    %p114 = scmp.eq.s32.totalorder %s13, 1
    %p115 = scmp.ne.s32.totalorder %s110, %s112
    %p116 = scmp.eq.s32.totalorder %s13, 0
    %p117 = por %p115, %p116
    %p118 = scmp.ne.s32.totalorder %s110, %s112
    %p119 = scmp.eq.s32.totalorder %s18, 1
    %p120 = por %p118, %p119
    %p121 = scmp.ne.s32.totalorder %s112, %s113
    %p122 = scmp.eq.s32.totalorder %s18, 0
    %p123 = por %p121, %p122
    %p124 = scmp.ne.s32.totalorder %s112, %s113
    %p125 = scmp.eq.s32.totalorder %s19, 1
    %p126 = por %p124, %p125
    %p128 = scmp.ne.s32.totalorder %s113, %s127
    %p129 = scmp.eq.s32.totalorder %s19, 0
    %p130 = por %p128, %p129
    %s132 = sadd.s32 %s131, 1
    %p135 = scmp.eq.s32.totalorder %s13, 1
    %p136 = scmp.ne.s32.totalorder %s131, %s133
    %p137 = scmp.eq.s32.totalorder %s13, 0
    %p138 = por %p136, %p137
    %p139 = scmp.ne.s32.totalorder %s131, %s133
    %p140 = scmp.eq.s32.totalorder %s18, 1
    %p141 = por %p139, %p140
    %p142 = scmp.ne.s32.totalorder %s133, %s134
    %p143 = scmp.eq.s32.totalorder %s18, 0
    %p144 = por %p142, %p143
    %p145 = scmp.ne.s32.totalorder %s133, %s134
    %p146 = scmp.eq.s32.totalorder %s19, 1
    %p147 = por %p145, %p146
    %p149 = scmp.ne.s32.totalorder %s134, %s148
    %p150 = scmp.eq.s32.totalorder %s19, 0
    %p151 = por %p149, %p150
    %s153 = sadd.s32 %s152, 1
    %p156 = scmp.eq.s32.totalorder %s13, 1
    %p157 = scmp.ne.s32.totalorder %s152, %s154
    %p158 = scmp.eq.s32.totalorder %s13, 0
    %p159 = por %p157, %p158
    %p160 = scmp.ne.s32.totalorder %s152, %s154
    %p161 = scmp.eq.s32.totalorder %s18, 1
    %p162 = por %p160, %p161
    %p163 = scmp.ne.s32.totalorder %s154, %s155
    %p164 = scmp.eq.s32.totalorder %s18, 0
    %p165 = por %p163, %p164
    %p166 = scmp.ne.s32.totalorder %s154, %s155
    %p167 = scmp.eq.s32.totalorder %s19, 1
    %p168 = por %p166, %p167
    %p170 = scmp.ne.s32.totalorder %s155, %s169
    %p171 = scmp.eq.s32.totalorder %s19, 0
    %p172 = por %p170, %p171
    %s173 = ssub.s32 %s13, %s20
    %p174 = scmp.eq.s32.totalorder %s173, 0
    %s176 = sadd.s32 %s175, 1
    %s177 = scalar_select %p174, %s175, %s176
    %p180 = pneg %p174
    %p181 = scmp.eq.s32.totalorder %s13, 1
    %p182 = por %p180, %p181
    %p183 = scmp.ne.s32.totalorder %s175, %s178
    %p184 = scmp.eq.s32.totalorder %s13, 0
    %p185 = por %p183, %p184
    %p186 = scmp.ne.s32.totalorder %s175, %s178
    %p187 = scmp.eq.s32.totalorder %s18, 1
    %p188 = por %p186, %p187
    %p189 = scmp.ne.s32.totalorder %s178, %s179
    %p190 = scmp.eq.s32.totalorder %s18, 0
    %p191 = por %p189, %p190
    %p192 = scmp.ne.s32.totalorder %s178, %s179
    %p193 = scmp.eq.s32.totalorder %s19, 1
    %p194 = por %p192, %p193
    %p196 = scmp.ne.s32.totalorder %s179, %s195
    %p197 = scmp.eq.s32.totalorder %s19, 0
    %p198 = por %p196, %p197
    %p199 = scmp.le.s32.totalorder 1, %s13
    %p200 = scmp.lt.s32.totalorder %s13, 3
    %p201 = pnand %p199, %p200
    %p202 = pneg %p201
    // Predicated region
    $region9: #{_mlp_forward.1} parent=5 // pred_check
      _
    $region10: #{_mlp_forward.1} parent=5 // pred_check_branch
      %204 = sbr.rel (%p201) target = $region12
    $region11: #{_mlp_forward.1} parent=5 // pred_region
      %s205 = ssub.s32 %s13, 1
      // Predicated region
      $region13: #{_mlp_forward.1} parent=11 // pred_check
        %p206 = pneg %p60
      $region14: #{_mlp_forward.1} parent=11 // pred_check_branch
        %208 = sbr.rel (%p206) target = $region16
      $region15: #{_mlp_forward.1} parent=11 // pred_region
        _
      $region16: #{_mlp_forward.1} parent=11 // pred_fallthru
        _
      // Predicated region
      $region17: #{_mlp_forward.1} parent=11 // pred_check
        %p209 = pneg %p81
      $region18: #{_mlp_forward.1} parent=11 // pred_check_branch
        %211 = sbr.rel (%p209) target = $region20
      $region19: #{_mlp_forward.1} parent=11 // pred_region
        _
      $region20: #{_mlp_forward.1} parent=11 // pred_fallthru
        _
      // Predicated region
      $region21: #{_mlp_forward.1} parent=11 // pred_check
        %p212 = pneg %p102
      $region22: #{_mlp_forward.1} parent=11 // pred_check_branch
        %214 = sbr.rel (%p212) target = $region24
      $region23: #{_mlp_forward.1} parent=11 // pred_region
        _
      $region24: #{_mlp_forward.1} parent=11 // pred_fallthru
        _
      // Predicated region
      $region25: #{_mlp_forward.1} parent=11 // pred_check
        %p215 = pneg %p123
      $region26: #{_mlp_forward.1} parent=11 // pred_check_branch
        %217 = sbr.rel (%p215) target = $region28
      $region27: #{_mlp_forward.1} parent=11 // pred_region
        _
      $region28: #{_mlp_forward.1} parent=11 // pred_fallthru
        _
      // Predicated region
      $region29: #{_mlp_forward.1} parent=11 // pred_check
        %p218 = pneg %p144
      $region30: #{_mlp_forward.1} parent=11 // pred_check_branch
        %220 = sbr.rel (%p218) target = $region32
      $region31: #{_mlp_forward.1} parent=11 // pred_region
        _
      $region32: #{_mlp_forward.1} parent=11 // pred_fallthru
        _
      // Predicated region
      $region33: #{_mlp_forward.1} parent=11 // pred_check
        %p221 = pneg %p165
      $region34: #{_mlp_forward.1} parent=11 // pred_check_branch
        %223 = sbr.rel (%p221) target = $region36
      $region35: #{_mlp_forward.1} parent=11 // pred_region
        _
      $region36: #{_mlp_forward.1} parent=11 // pred_fallthru
        _
    $region12: #{_mlp_forward.1} parent=5 // pred_fallthru
      _
    %p224 = scmp.lt.s32.totalorder %s13, 2
    // Predicated region
    $region37: #{_mlp_forward.1} parent=5 // pred_check
      %p225 = pneg %p224
    $region38: #{_mlp_forward.1} parent=5 // pred_check_branch
      %227 = sbr.rel (%p225) target = $region40
    $region39: #{_mlp_forward.1} parent=5 // pred_region
      // Predicated region
      $region41: #{_mlp_forward.1} parent=39 // pred_check
        %p228 = pneg %p33
      $region42: #{_mlp_forward.1} parent=39 // pred_check_branch
        %230 = sbr.rel (%p228) target = $region44
      $region43: #{_mlp_forward.1} parent=39 // pred_region
        %s231 = smul.u32 32, %s13
        %p232 = scmp.lt.s32.totalorder %s231, 63
        %s233 = scalar_select %p232, %s231, 63
        %s234 = smul.addr %s233, 8
        %s235 = scalar_lea.vmem %s0, %s234
        %s236 = smul.u32 32, %s13
      $region44: #{_mlp_forward.1} parent=39 // pred_fallthru
        _
    $region40: #{_mlp_forward.1} parent=5 // pred_fallthru
      _
    %p237 = scmp.le.s32.totalorder 1, %s13
    %p238 = scmp.lt.s32.totalorder %s13, 3
    %p239 = pnand %p237, %p238
    %p240 = pneg %p239
    // Predicated region
    $region45: #{_mlp_forward.1} parent=5 // pred_check
      _
    $region46: #{_mlp_forward.1} parent=5 // pred_check_branch
      %242 = sbr.rel (%p239) target = $region48
    $region47: #{_mlp_forward.1} parent=5 // pred_region
      %s243 = ssub.s32 %s13, 1
      %s244 = smul.u32 32, %s18
      %p245 = scmp.lt.s32.totalorder %s244, 63
      %s246 = scalar_select %p245, %s244, 63
      %s247 = smul.addr %s246, 8
      %s248 = scalar_lea.vmem %s0, %s247
      %p249 = pneg %p39
      %p250 = pneg %p36
      %p251 = pneg %p60
      %p252 = pneg %p57
      %p253 = pneg %p81
      %p254 = pneg %p78
      %p255 = pneg %p102
      %p256 = pneg %p99
      %p257 = pneg %p123
      %p258 = pneg %p120
      %p259 = pneg %p144
      %p260 = pneg %p141
      %p261 = pneg %p165
      %p262 = pneg %p162
      %p263 = pneg %p191
      %p264 = pneg %p188
      %s265 = smul.u32 32, %s18
      %p266 = scmp.lt.s32.totalorder %s265, 63
      %s267 = scalar_select %p266, %s265, 63
      %s268 = smul.addr %s267, 8
      %s269 = scalar_lea.vmem %s7, %s268
      %s270 = smul.u32 32, %s18
      %p271 = scmp.lt.s32.totalorder %s270, 63
      %s272 = scalar_select %p271, %s270, 63
      %s273 = smul.addr %s272, 8
      %s274 = scalar_lea.vmem %s0, %s273
      %s275 = smul.u32 32, %s18
      %s276 = smul.u32 32, %s18
      %p277 = scmp.lt.s32.totalorder %s276, 63
      %s278 = scalar_select %p277, %s276, 63
      %s279 = smul.addr %s278, 8
      %s280 = scalar_lea.vmem %s7, %s279
      %s281 = smul.u32 32, %s18
      %v283 = vld [vmem:[%s274] sm:$0xff]
      %v284 = vld [vmem:[%s274 + $0x8] sm:$0xff]
      %v285 = vld [vmem:[%s274 + $0x10] sm:$0xff]
      %v286 = vld [vmem:[%s274 + $0x18] sm:$0xff]
      %v287 = vld [vmem:[%s274 + $0x20] sm:$0xff]
      %v288 = vld [vmem:[%s274 + $0x28] sm:$0xff]
      %v289 = vld [vmem:[%s274 + $0x30] sm:$0xff]
      %v290 = vld [vmem:[%s274 + $0x38] sm:$0xff]
      %v291 = vld [vmem:[%s274 + $0x40] sm:$0xff]
      %v292 = vld [vmem:[%s274 + $0x48] sm:$0xff]
      %v293 = vld [vmem:[%s274 + $0x50] sm:$0xff]
      %v294 = vld [vmem:[%s274 + $0x58] sm:$0xff]
      %v295 = vld [vmem:[%s274 + $0x60] sm:$0xff]
      %v296 = vld [vmem:[%s274 + $0x68] sm:$0xff]
      %v297 = vld [vmem:[%s274 + $0x70] sm:$0xff]
      %v298 = vld [vmem:[%s274 + $0x78] sm:$0xff]
      %v299 = vld [vmem:[%s274 + $0x80] sm:$0xff]
      %v300 = vld [vmem:[%s274 + $0x88] sm:$0xff]
      %v301 = vld [vmem:[%s274 + $0x90] sm:$0xff]
      %v302 = vld [vmem:[%s274 + $0x98] sm:$0xff]
      %v303 = vld [vmem:[%s274 + $0xa0] sm:$0xff]
      %v304 = vld [vmem:[%s274 + $0xa8] sm:$0xff]
      %v305 = vld [vmem:[%s274 + $0xb0] sm:$0xff]
      %v306 = vld [vmem:[%s274 + $0xb8] sm:$0xff]
      %v307 = vld [vmem:[%s274 + $0xc0] sm:$0xff]
      %v308 = vld [vmem:[%s274 + $0xc8] sm:$0xff]
      %v309 = vld [vmem:[%s274 + $0xd0] sm:$0xff]
      %v310 = vld [vmem:[%s274 + $0xd8] sm:$0xff]
      %v311 = vld [vmem:[%s274 + $0xe0] sm:$0xff]
      %v312 = vld [vmem:[%s274 + $0xe8] sm:$0xff]
      %v313 = vld [vmem:[%s274 + $0xf0] sm:$0xff]
      %v314 = vld [vmem:[%s274 + $0xf8] sm:$0xff]
      %v315 = vld [vmem:[%s1] sm:$0xf]
      %v316 = vld [vmem:[%s1 + $0x4] sm:$0xf]
      %v317 = vld [vmem:[%s2] sm:$0x1]
      %v318 = vpack.c.bf16 %v284, %v283
      %v319 = vpack.c.bf16 %v286, %v285
      %v320 = vpack.c.bf16 %v288, %v287
      %v321 = vpack.c.bf16 %v290, %v289
      %v322 = vpack.c.bf16 %v292, %v291
      %v323 = vpack.c.bf16 %v294, %v293
      %v324 = vpack.c.bf16 %v296, %v295
      %v325 = vpack.c.bf16 %v298, %v297
      %v326 = vpack.c.bf16 %v300, %v299
      %v327 = vpack.c.bf16 %v302, %v301
      %v328 = vpack.c.bf16 %v304, %v303
      %v329 = vpack.c.bf16 %v306, %v305
      %v330 = vpack.c.bf16 %v308, %v307
      %v331 = vpack.c.bf16 %v310, %v309
      %v332 = vpack.c.bf16 %v312, %v311
      %v333 = vpack.c.bf16 %v314, %v313
      %v335 = vlaneseq
      %v336 = vshrl.u32 %v335, 7
      %v337 = vsub.s32 0, %v336
      %v338 = vrot.slane %v317, %v337
      %v342 = vunpack.c.l.b16 %v315
      %v343 = vunpack.c.l.b16 %v316
      %v344 = vpack.c.b16 %v343, %v342
      %vm346 = vcmask 130048
      %v348 = vsel %vm346, %v318, 0
      %v351 = vsel %vm346, %v319, 0
      %v354 = vsel %vm346, %v320, 0
      %v357 = vsel %vm346, %v321, 0
      %v360 = vsel %vm346, %v322, 0
      %v363 = vsel %vm346, %v323, 0
      %v366 = vsel %vm346, %v324, 0
      %v369 = vsel %vm346, %v325, 0
      %v372 = vsel %vm346, %v326, 0
      %v375 = vsel %vm346, %v327, 0
      %v378 = vsel %vm346, %v328, 0
      %v381 = vsel %vm346, %v329, 0
      %v384 = vsel %vm346, %v330, 0
      %v387 = vsel %vm346, %v331, 0
      %v390 = vsel %vm346, %v332, 0
      %v393 = vsel %vm346, %v333, 0
      %395 = vmatprep.subr.bf16.mxu0 0
      %396 = vmatpush1.bf16.msra.mxu0 %v344
      %397 = vmatprep.subr.bf16.mxu0 0
      %398 = vmatpush1.bf16.msra.mxu0 0
      %399 = vmatprep.subr.bf16.mxu0 0
      %400 = vmatpush1.bf16.msra.mxu0 0
      %401 = vmatprep.subr.bf16.mxu0 0
      %402 = vmatpush1.bf16.msra.mxu0 0
      %403 = vmatprep.subr.bf16.mxu0 0
      %404 = vmatpush1.bf16.msra.mxu0 0
      %405 = vmatprep.subr.bf16.mxu0 0
      %406 = vmatpush1.bf16.msra.mxu0 0
      %407 = vmatprep.subr.bf16.mxu0 0
      %408 = vmatpush1.bf16.msra.mxu0 0
      %409 = vmatprep.subr.bf16.mxu0 0
      %410 = vmatpush1.bf16.msra.mxu0 0
      %411 = vmatprep.subr.bf16.mxu0 0
      %412 = vmatpush1.bf16.msra.mxu0 0
      %413 = vmatprep.subr.bf16.mxu0 0
      %414 = vmatpush1.bf16.msra.mxu0 0
      %415 = vmatprep.subr.bf16.mxu0 0
      %416 = vmatpush1.bf16.msra.mxu0 0
      %417 = vmatprep.subr.bf16.mxu0 0
      %418 = vmatpush1.bf16.msra.mxu0 0
      %419 = vmatprep.subr.bf16.mxu0 0
      %420 = vmatpush1.bf16.msra.mxu0 0
      %421 = vmatprep.subr.bf16.mxu0 0
      %422 = vmatpush1.bf16.msra.mxu0 0
      %423 = vmatprep.subr.bf16.mxu0 0
      %424 = vmatpush1.bf16.msra.mxu0 0
      %425 = vmatprep.subr.bf16.mxu0 0
      %426 = vmatpush1.bf16.msra.mxu0 0
      %427 = vmatprep.mubr.bf16.mxu0 0
      %428 = vmatmul.mubr.bf16.gmra.mrb[0].mxu0 %v348
      %v429 = vpop.f32.mrb[0].mxu0
      %v430 = vadd.f32 %v338, %v429
      %v431 = vpop.f32.mrb[0].mxu0
      %v432 = vpop.f32.mrb[0].mxu0
      %v433 = vadd.f32 %v338, %v432
      %v434 = vpop.f32.mrb[0].mxu0
      %435 = vmatprep.mubr.bf16.mxu0 0
      %436 = vmatmul.mubr.bf16.gmra.mrb[0].mxu0 %v351
      %v437 = vpop.f32.mrb[0].mxu0
      %v438 = vadd.f32 %v338, %v437
      %v439 = vpop.f32.mrb[0].mxu0
      %v440 = vpop.f32.mrb[0].mxu0
      %v441 = vadd.f32 %v338, %v440
      %v442 = vpop.f32.mrb[0].mxu0
      %443 = vmatprep.mubr.bf16.mxu0 0
      %444 = vmatmul.mubr.bf16.gmra.mrb[0].mxu0 %v354
      %v445 = vpop.f32.mrb[0].mxu0
      %v446 = vadd.f32 %v338, %v445
      %v447 = vpop.f32.mrb[0].mxu0
      %v448 = vpop.f32.mrb[0].mxu0
      %v449 = vadd.f32 %v338, %v448
      %v450 = vpop.f32.mrb[0].mxu0
      %451 = vmatprep.mubr.bf16.mxu0 0
      %452 = vmatmul.mubr.bf16.gmra.mrb[0].mxu0 %v357
      %v453 = vpop.f32.mrb[0].mxu0
      %v454 = vadd.f32 %v338, %v453
      %v455 = vpop.f32.mrb[0].mxu0
      %v456 = vpop.f32.mrb[0].mxu0
      %v457 = vadd.f32 %v338, %v456
      %v458 = vpop.f32.mrb[0].mxu0
      %459 = vmatprep.mubr.bf16.mxu0 0
      %460 = vmatmul.mubr.bf16.gmra.mrb[0].mxu0 %v360
      %v461 = vpop.f32.mrb[0].mxu0
      %v462 = vadd.f32 %v338, %v461
      %v463 = vpop.f32.mrb[0].mxu0
      %v464 = vpop.f32.mrb[0].mxu0
      %v465 = vadd.f32 %v338, %v464
      %v466 = vpop.f32.mrb[0].mxu0
      %467 = vmatprep.mubr.bf16.mxu0 0
      %468 = vmatmul.mubr.bf16.gmra.mrb[0].mxu0 %v363
      %v469 = vpop.f32.mrb[0].mxu0
      %v470 = vadd.f32 %v338, %v469
      %v471 = vpop.f32.mrb[0].mxu0
      %v472 = vpop.f32.mrb[0].mxu0
      %v473 = vadd.f32 %v338, %v472
      %v474 = vpop.f32.mrb[0].mxu0
      %475 = vmatprep.mubr.bf16.mxu0 0
      %476 = vmatmul.mubr.bf16.gmra.mrb[0].mxu0 %v366
      %v477 = vpop.f32.mrb[0].mxu0
      %v478 = vadd.f32 %v338, %v477
      %v479 = vpop.f32.mrb[0].mxu0
      %v480 = vpop.f32.mrb[0].mxu0
      %v481 = vadd.f32 %v338, %v480
      %v482 = vpop.f32.mrb[0].mxu0
      %483 = vmatprep.mubr.bf16.mxu0 0
      %484 = vmatmul.mubr.bf16.gmra.mrb[0].mxu0 %v369
      %v485 = vpop.f32.mrb[0].mxu0
      %v486 = vadd.f32 %v338, %v485
      %v487 = vpop.f32.mrb[0].mxu0
      %v488 = vpop.f32.mrb[0].mxu0
      %v489 = vadd.f32 %v338, %v488
      %v490 = vpop.f32.mrb[0].mxu0
      %491 = vmatprep.mubr.bf16.mxu0 0
      %492 = vmatmul.mubr.bf16.gmra.mrb[0].mxu0 %v372
      %v493 = vpop.f32.mrb[0].mxu0
      %v494 = vadd.f32 %v338, %v493
      %v495 = vpop.f32.mrb[0].mxu0
      %v496 = vpop.f32.mrb[0].mxu0
      %v497 = vadd.f32 %v338, %v496
      %v498 = vpop.f32.mrb[0].mxu0
      %499 = vmatprep.mubr.bf16.mxu0 0
      %500 = vmatmul.mubr.bf16.gmra.mrb[0].mxu0 %v375
      %v501 = vpop.f32.mrb[0].mxu0
      %v502 = vadd.f32 %v338, %v501
      %v503 = vpop.f32.mrb[0].mxu0
      %v504 = vpop.f32.mrb[0].mxu0
      %v505 = vadd.f32 %v338, %v504
      %v506 = vpop.f32.mrb[0].mxu0
      %507 = vmatprep.mubr.bf16.mxu0 0
      %508 = vmatmul.mubr.bf16.gmra.mrb[0].mxu0 %v378
      %v509 = vpop.f32.mrb[0].mxu0
      %v510 = vadd.f32 %v338, %v509
      %v511 = vpop.f32.mrb[0].mxu0
      %v512 = vpop.f32.mrb[0].mxu0
      %v513 = vadd.f32 %v338, %v512
      %v514 = vpop.f32.mrb[0].mxu0
      %515 = vmatprep.mubr.bf16.mxu0 0
      %516 = vmatmul.mubr.bf16.gmra.mrb[0].mxu0 %v381
      %v517 = vpop.f32.mrb[0].mxu0
      %v518 = vadd.f32 %v338, %v517
      %v519 = vpop.f32.mrb[0].mxu0
      %v520 = vpop.f32.mrb[0].mxu0
      %v521 = vadd.f32 %v338, %v520
      %v522 = vpop.f32.mrb[0].mxu0
      %523 = vmatprep.mubr.bf16.mxu0 0
      %524 = vmatmul.mubr.bf16.gmra.mrb[0].mxu0 %v384
      %v525 = vpop.f32.mrb[0].mxu0
      %v526 = vadd.f32 %v338, %v525
      %v527 = vpop.f32.mrb[0].mxu0
      %v528 = vpop.f32.mrb[0].mxu0
      %v529 = vadd.f32 %v338, %v528
      %v530 = vpop.f32.mrb[0].mxu0
      %531 = vmatprep.mubr.bf16.mxu0 0
      %532 = vmatmul.mubr.bf16.gmra.mrb[0].mxu0 %v387
      %v533 = vpop.f32.mrb[0].mxu0
      %v534 = vadd.f32 %v338, %v533
      %v535 = vpop.f32.mrb[0].mxu0
      %v536 = vpop.f32.mrb[0].mxu0
      %v537 = vadd.f32 %v338, %v536
      %v538 = vpop.f32.mrb[0].mxu0
      %539 = vmatprep.mubr.bf16.mxu0 0
      %540 = vmatmul.mubr.bf16.gmra.mrb[0].mxu0 %v390
      %v541 = vpop.f32.mrb[0].mxu0
      %v542 = vadd.f32 %v338, %v541
      %v543 = vpop.f32.mrb[0].mxu0
      %v544 = vpop.f32.mrb[0].mxu0
      %v545 = vadd.f32 %v338, %v544
      %v546 = vpop.f32.mrb[0].mxu0
      %547 = vmatprep.mubr.bf16.mxu0 0
      %548 = vmatmul.mubr.bf16.gmra.mrb[0].mxu0 %v393
      %v549 = vpop.f32.mrb[0].mxu0
      %v550 = vadd.f32 %v338, %v549
      %v551 = vpop.f32.mrb[0].mxu0
      %v552 = vpop.f32.mrb[0].mxu0
      %v553 = vadd.f32 %v338, %v552
      %v554 = vpop.f32.mrb[0].mxu0
      %555 = vdwg.mxu0
      %v556 = vsub.f32 0.0, %v430
      %v557 = vsub.f32 0.0, %v433
      %v558 = vsub.f32 0.0, %v438
      %v559 = vsub.f32 0.0, %v441
      %v560 = vsub.f32 0.0, %v446
      %v561 = vsub.f32 0.0, %v449
      %v562 = vsub.f32 0.0, %v454
      %v563 = vsub.f32 0.0, %v457
      %v564 = vsub.f32 0.0, %v462
      %v565 = vsub.f32 0.0, %v465
      %v566 = vsub.f32 0.0, %v470
      %v567 = vsub.f32 0.0, %v473
      %v568 = vsub.f32 0.0, %v478
      %v569 = vsub.f32 0.0, %v481
      %v570 = vsub.f32 0.0, %v486
      %v571 = vsub.f32 0.0, %v489
      %v572 = vsub.f32 0.0, %v494
      %v573 = vsub.f32 0.0, %v497
      %v574 = vsub.f32 0.0, %v502
      %v575 = vsub.f32 0.0, %v505
      %v576 = vsub.f32 0.0, %v510
      %v577 = vsub.f32 0.0, %v513
      %v578 = vsub.f32 0.0, %v518
      %v579 = vsub.f32 0.0, %v521
      %v580 = vsub.f32 0.0, %v526
      %v581 = vsub.f32 0.0, %v529
      %v582 = vsub.f32 0.0, %v534
      %v583 = vsub.f32 0.0, %v537
      %v584 = vsub.f32 0.0, %v542
      %v585 = vsub.f32 0.0, %v545
      %v586 = vsub.f32 0.0, %v550
      %v587 = vsub.f32 0.0, %v553
      %v588 = vmul.f32 %v556, 1.442695
      %v589 = vpow.pop %v588
      %v590 = vmul.f32 %v557, 1.442695
      %v591 = vpow.pop %v590
      %v592 = vmul.f32 %v558, 1.442695
      %v593 = vpow.pop %v592
      %v594 = vmul.f32 %v559, 1.442695
      %v595 = vpow.pop %v594
      %v596 = vmul.f32 %v560, 1.442695
      %v597 = vpow.pop %v596
      %v598 = vmul.f32 %v561, 1.442695
      %v599 = vpow.pop %v598
      %v600 = vmul.f32 %v562, 1.442695
      %v601 = vpow.pop %v600
      %v602 = vmul.f32 %v563, 1.442695
      %v603 = vpow.pop %v602
      %v604 = vmul.f32 %v564, 1.442695
      %v605 = vpow.pop %v604
      %v606 = vmul.f32 %v565, 1.442695
      %v607 = vpow.pop %v606
      %v608 = vmul.f32 %v566, 1.442695
      %v609 = vpow.pop %v608
      %v610 = vmul.f32 %v567, 1.442695
      %v611 = vpow.pop %v610
      %v612 = vmul.f32 %v568, 1.442695
      %v613 = vpow.pop %v612
      %v614 = vmul.f32 %v569, 1.442695
      %v615 = vpow.pop %v614
      %v616 = vmul.f32 %v570, 1.442695
      %v617 = vpow.pop %v616
      %v618 = vmul.f32 %v571, 1.442695
      %v619 = vpow.pop %v618
      %v620 = vmul.f32 %v572, 1.442695
      %v621 = vpow.pop %v620
      %v622 = vmul.f32 %v573, 1.442695
      %v623 = vpow.pop %v622
      %v624 = vmul.f32 %v574, 1.442695
      %v625 = vpow.pop %v624
      %v626 = vmul.f32 %v575, 1.442695
      %v627 = vpow.pop %v626
      %v628 = vmul.f32 %v576, 1.442695
      %v629 = vpow.pop %v628
      %v630 = vmul.f32 %v577, 1.442695
      %v631 = vpow.pop %v630
      %v632 = vmul.f32 %v578, 1.442695
      %v633 = vpow.pop %v632
      %v634 = vmul.f32 %v579, 1.442695
      %v635 = vpow.pop %v634
      %v636 = vmul.f32 %v580, 1.442695
      %v637 = vpow.pop %v636
      %v638 = vmul.f32 %v581, 1.442695
      %v639 = vpow.pop %v638
      %v640 = vmul.f32 %v582, 1.442695
      %v641 = vpow.pop %v640
      %v642 = vmul.f32 %v583, 1.442695
      %v643 = vpow.pop %v642
      %v644 = vmul.f32 %v584, 1.442695
      %v645 = vpow.pop %v644
      %v646 = vmul.f32 %v585, 1.442695
      %v647 = vpow.pop %v646
      %v648 = vmul.f32 %v586, 1.442695
      %v649 = vpow.pop %v648
      %v650 = vmul.f32 %v587, 1.442695
      %v651 = vpow.pop %v650
      %v652 = vadd.f32 %v589, 1.0
      %v653 = vadd.f32 %v591, 1.0
      %v654 = vadd.f32 %v593, 1.0
      %v655 = vadd.f32 %v595, 1.0
      %v656 = vadd.f32 %v597, 1.0
      %v657 = vadd.f32 %v599, 1.0
      %v658 = vadd.f32 %v601, 1.0
      %v659 = vadd.f32 %v603, 1.0
      %v660 = vadd.f32 %v605, 1.0
      %v661 = vadd.f32 %v607, 1.0
      %v662 = vadd.f32 %v609, 1.0
      %v663 = vadd.f32 %v611, 1.0
      %v664 = vadd.f32 %v613, 1.0
      %v665 = vadd.f32 %v615, 1.0
      %v666 = vadd.f32 %v617, 1.0
      %v667 = vadd.f32 %v619, 1.0
      %v668 = vadd.f32 %v621, 1.0
      %v669 = vadd.f32 %v623, 1.0
      %v670 = vadd.f32 %v625, 1.0
      %v671 = vadd.f32 %v627, 1.0
      %v672 = vadd.f32 %v629, 1.0
      %v673 = vadd.f32 %v631, 1.0
      %v674 = vadd.f32 %v633, 1.0
      %v675 = vadd.f32 %v635, 1.0
      %v676 = vadd.f32 %v637, 1.0
      %v677 = vadd.f32 %v639, 1.0
      %v678 = vadd.f32 %v641, 1.0
      %v679 = vadd.f32 %v643, 1.0
      %v680 = vadd.f32 %v645, 1.0
      %v681 = vadd.f32 %v647, 1.0
      %v682 = vadd.f32 %v649, 1.0
      %v683 = vadd.f32 %v651, 1.0
      %v684 = vrcp.pop %v652
      %v685 = vmul.f32 1.0, %v684
      %v686 = vrcp.pop %v653
      %v687 = vmul.f32 1.0, %v686
      %v688 = vrcp.pop %v654
      %v689 = vmul.f32 1.0, %v688
      %v690 = vrcp.pop %v655
      %v691 = vmul.f32 1.0, %v690
      %v692 = vrcp.pop %v656
      %v693 = vmul.f32 1.0, %v692
      %v694 = vrcp.pop %v657
      %v695 = vmul.f32 1.0, %v694
      %v696 = vrcp.pop %v658
      %v697 = vmul.f32 1.0, %v696
      %v698 = vrcp.pop %v659
      %v699 = vmul.f32 1.0, %v698
      %v700 = vrcp.pop %v660
      %v701 = vmul.f32 1.0, %v700
      %v702 = vrcp.pop %v661
      %v703 = vmul.f32 1.0, %v702
      %v704 = vrcp.pop %v662
      %v705 = vmul.f32 1.0, %v704
      %v706 = vrcp.pop %v663
      %v707 = vmul.f32 1.0, %v706
      %v708 = vrcp.pop %v664
      %v709 = vmul.f32 1.0, %v708
      %v710 = vrcp.pop %v665
      %v711 = vmul.f32 1.0, %v710
      %v712 = vrcp.pop %v666
      %v713 = vmul.f32 1.0, %v712
      %v714 = vrcp.pop %v667
      %v715 = vmul.f32 1.0, %v714
      %v716 = vrcp.pop %v668
      %v717 = vmul.f32 1.0, %v716
      %v718 = vrcp.pop %v669
      %v719 = vmul.f32 1.0, %v718
      %v720 = vrcp.pop %v670
      %v721 = vmul.f32 1.0, %v720
      %v722 = vrcp.pop %v671
      %v723 = vmul.f32 1.0, %v722
      %v724 = vrcp.pop %v672
      %v725 = vmul.f32 1.0, %v724
      %v726 = vrcp.pop %v673
      %v727 = vmul.f32 1.0, %v726
      %v728 = vrcp.pop %v674
      %v729 = vmul.f32 1.0, %v728
      %v730 = vrcp.pop %v675
      %v731 = vmul.f32 1.0, %v730
      %v732 = vrcp.pop %v676
      %v733 = vmul.f32 1.0, %v732
      %v734 = vrcp.pop %v677
      %v735 = vmul.f32 1.0, %v734
      %v736 = vrcp.pop %v678
      %v737 = vmul.f32 1.0, %v736
      %v738 = vrcp.pop %v679
      %v739 = vmul.f32 1.0, %v738
      %v740 = vrcp.pop %v680
      %v741 = vmul.f32 1.0, %v740
      %v742 = vrcp.pop %v681
      %v743 = vmul.f32 1.0, %v742
      %v744 = vrcp.pop %v682
      %v745 = vmul.f32 1.0, %v744
      %v746 = vrcp.pop %v683
      %v747 = vmul.f32 1.0, %v746
      %v748 = vld [vmem:[%s3] sm:$0xf]
      %v749 = vld [vmem:[%s3 + $0x4] sm:$0xf]
      %v750 = vld [vmem:[%s3 + $0x8] sm:$0xf]
      %v751 = vld [vmem:[%s3 + $0xc] sm:$0xf]
      %v752 = vld [vmem:[%s3 + $0x10] sm:$0xf]
      %v753 = vld [vmem:[%s3 + $0x14] sm:$0xf]
      %v754 = vld [vmem:[%s3 + $0x18] sm:$0xf]
      %v755 = vld [vmem:[%s3 + $0x1c] sm:$0xf]
      %v756 = vld [vmem:[%s3 + $0x20] sm:$0xf]
      %v757 = vld [vmem:[%s3 + $0x24] sm:$0xf]
      %v758 = vld [vmem:[%s3 + $0x28] sm:$0xf]
      %v759 = vld [vmem:[%s3 + $0x2c] sm:$0xf]
      %v760 = vld [vmem:[%s3 + $0x30] sm:$0xf]
      %v761 = vld [vmem:[%s3 + $0x34] sm:$0xf]
      %v762 = vld [vmem:[%s3 + $0x38] sm:$0xf]
      %v763 = vld [vmem:[%s3 + $0x3c] sm:$0xf]
      %v764 = vld [vmem:[%s4] sm:$0x1]
      %v765 = vpack.c.bf16 %v687, %v685
      %v766 = vpack.c.bf16 %v691, %v689
      %v767 = vpack.c.bf16 %v695, %v693
      %v768 = vpack.c.bf16 %v699, %v697
      %v769 = vpack.c.bf16 %v703, %v701
      %v770 = vpack.c.bf16 %v707, %v705
      %v771 = vpack.c.bf16 %v711, %v709
      %v772 = vpack.c.bf16 %v715, %v713
      %v773 = vpack.c.bf16 %v719, %v717
      %v774 = vpack.c.bf16 %v723, %v721
      %v775 = vpack.c.bf16 %v727, %v725
      %v776 = vpack.c.bf16 %v731, %v729
      %v777 = vpack.c.bf16 %v735, %v733
      %v778 = vpack.c.bf16 %v739, %v737
      %v779 = vpack.c.bf16 %v743, %v741
      %v780 = vpack.c.bf16 %v747, %v745
      %v782 = vlaneseq
      %v783 = vshrl.u32 %v782, 7
      %v784 = vsub.s32 0, %v783
      %v785 = vrot.slane %v764, %v784
      %v803 = vunpack.c.l.b16 %v748
      %v804 = vunpack.c.l.b16 %v749
      %v805 = vunpack.c.l.b16 %v750
      %v806 = vunpack.c.l.b16 %v751
      %v807 = vunpack.c.l.b16 %v752
      %v808 = vunpack.c.l.b16 %v753
      %v809 = vunpack.c.l.b16 %v754
      %v810 = vunpack.c.l.b16 %v755
      %v811 = vunpack.c.l.b16 %v756
      %v812 = vunpack.c.l.b16 %v757
      %v813 = vunpack.c.l.b16 %v758
      %v814 = vunpack.c.l.b16 %v759
      %v815 = vunpack.c.l.b16 %v760
      %v816 = vunpack.c.l.b16 %v761
      %v817 = vunpack.c.l.b16 %v762
      %v818 = vunpack.c.l.b16 %v763
      %v819 = vpack.c.b16 %v804, %v803
      %v820 = vpack.c.b16 %v806, %v805
      %v821 = vpack.c.b16 %v808, %v807
      %v822 = vpack.c.b16 %v810, %v809
      %v823 = vpack.c.b16 %v812, %v811
      %v824 = vpack.c.b16 %v814, %v813
      %v825 = vpack.c.b16 %v816, %v815
      %v826 = vpack.c.b16 %v818, %v817
      %835 = vmatprep.subr.bf16.mxu0 0
      %836 = vmatpush1.bf16.msra.mxu0 %v819
      %837 = vmatprep.subr.bf16.mxu0 0
      %838 = vmatpush1.bf16.msra.mxu0 %v820
      %839 = vmatprep.subr.bf16.mxu0 0
      %840 = vmatpush1.bf16.msra.mxu0 %v821
      %841 = vmatprep.subr.bf16.mxu0 0
      %842 = vmatpush1.bf16.msra.mxu0 %v822
      %843 = vmatprep.subr.bf16.mxu0 0
      %844 = vmatpush1.bf16.msra.mxu0 %v823
      %845 = vmatprep.subr.bf16.mxu0 0
      %846 = vmatpush1.bf16.msra.mxu0 %v824
      %847 = vmatprep.subr.bf16.mxu0 0
      %848 = vmatpush1.bf16.msra.mxu0 %v825
      %849 = vmatprep.subr.bf16.mxu0 0
      %850 = vmatpush1.bf16.msra.mxu0 %v826
      %851 = vmatprep.subr.bf16.mxu0 0
      %852 = vmatpush1.bf16.msra.mxu0 0
      %853 = vmatprep.subr.bf16.mxu0 0
      %854 = vmatpush1.bf16.msra.mxu0 0
      %855 = vmatprep.subr.bf16.mxu0 0
      %856 = vmatpush1.bf16.msra.mxu0 0
      %857 = vmatprep.subr.bf16.mxu0 0
      %858 = vmatpush1.bf16.msra.mxu0 0
      %859 = vmatprep.subr.bf16.mxu0 0
      %860 = vmatpush1.bf16.msra.mxu0 0
      %861 = vmatprep.subr.bf16.mxu0 0
      %862 = vmatpush1.bf16.msra.mxu0 0
      %863 = vmatprep.subr.bf16.mxu0 0
      %864 = vmatpush1.bf16.msra.mxu0 0
      %865 = vmatprep.subr.bf16.mxu0 0
      %866 = vmatpush1.bf16.msra.mxu0 0
      %867 = vmatprep.mubr.bf16.mxu0 0
      %868 = vmatmul.mubr.bf16.gmra.mrb[0].mxu0 %v765
      %v869 = vpop.f32.mrb[0].mxu0
      %v870 = vadd.f32 %v785, %v869
      %v871 = vpop.f32.mrb[0].mxu0
      %v872 = vpop.f32.mrb[0].mxu0
      %v873 = vadd.f32 %v785, %v872
      %v874 = vpop.f32.mrb[0].mxu0
      %875 = vmatprep.mubr.bf16.mxu0 0
      %876 = vmatmul.mubr.bf16.gmra.mrb[0].mxu0 %v766
      %v877 = vpop.f32.mrb[0].mxu0
      %v878 = vadd.f32 %v785, %v877
      %v879 = vpop.f32.mrb[0].mxu0
      %v880 = vpop.f32.mrb[0].mxu0
      %v881 = vadd.f32 %v785, %v880
      %v882 = vpop.f32.mrb[0].mxu0
      %883 = vmatprep.mubr.bf16.mxu0 0
      %884 = vmatmul.mubr.bf16.gmra.mrb[0].mxu0 %v767
      %v885 = vpop.f32.mrb[0].mxu0
      %v886 = vadd.f32 %v785, %v885
      %v887 = vpop.f32.mrb[0].mxu0
      %v888 = vpop.f32.mrb[0].mxu0
      %v889 = vadd.f32 %v785, %v888
      %v890 = vpop.f32.mrb[0].mxu0
      %891 = vmatprep.mubr.bf16.mxu0 0
      %892 = vmatmul.mubr.bf16.gmra.mrb[0].mxu0 %v768
      %v893 = vpop.f32.mrb[0].mxu0
      %v894 = vadd.f32 %v785, %v893
      %v895 = vpop.f32.mrb[0].mxu0
      %v896 = vpop.f32.mrb[0].mxu0
      %v897 = vadd.f32 %v785, %v896
      %v898 = vpop.f32.mrb[0].mxu0
      %899 = vmatprep.mubr.bf16.mxu0 0
      %900 = vmatmul.mubr.bf16.gmra.mrb[0].mxu0 %v769
      %v901 = vpop.f32.mrb[0].mxu0
      %v902 = vadd.f32 %v785, %v901
      %v903 = vpop.f32.mrb[0].mxu0
      %v904 = vpop.f32.mrb[0].mxu0
      %v905 = vadd.f32 %v785, %v904
      %v906 = vpop.f32.mrb[0].mxu0
      %907 = vmatprep.mubr.bf16.mxu0 0
      %908 = vmatmul.mubr.bf16.gmra.mrb[0].mxu0 %v770
      %v909 = vpop.f32.mrb[0].mxu0
      %v910 = vadd.f32 %v785, %v909
      %v911 = vpop.f32.mrb[0].mxu0
      %v912 = vpop.f32.mrb[0].mxu0
      %v913 = vadd.f32 %v785, %v912
      %v914 = vpop.f32.mrb[0].mxu0
      %915 = vmatprep.mubr.bf16.mxu0 0
      %916 = vmatmul.mubr.bf16.gmra.mrb[0].mxu0 %v771
      %v917 = vpop.f32.mrb[0].mxu0
      %v918 = vadd.f32 %v785, %v917
      %v919 = vpop.f32.mrb[0].mxu0
      %v920 = vpop.f32.mrb[0].mxu0
      %v921 = vadd.f32 %v785, %v920
      %v922 = vpop.f32.mrb[0].mxu0
      %923 = vmatprep.mubr.bf16.mxu0 0
      %924 = vmatmul.mubr.bf16.gmra.mrb[0].mxu0 %v772
      %v925 = vpop.f32.mrb[0].mxu0
      %v926 = vadd.f32 %v785, %v925
      %v927 = vpop.f32.mrb[0].mxu0
      %v928 = vpop.f32.mrb[0].mxu0
      %v929 = vadd.f32 %v785, %v928
      %v930 = vpop.f32.mrb[0].mxu0
      %931 = vmatprep.mubr.bf16.mxu0 0
      %932 = vmatmul.mubr.bf16.gmra.mrb[0].mxu0 %v773
      %v933 = vpop.f32.mrb[0].mxu0
      %v934 = vadd.f32 %v785, %v933
      %v935 = vpop.f32.mrb[0].mxu0
      %v936 = vpop.f32.mrb[0].mxu0
      %v937 = vadd.f32 %v785, %v936
      %v938 = vpop.f32.mrb[0].mxu0
      %939 = vmatprep.mubr.bf16.mxu0 0
      %940 = vmatmul.mubr.bf16.gmra.mrb[0].mxu0 %v774
      %v941 = vpop.f32.mrb[0].mxu0
      %v942 = vadd.f32 %v785, %v941
      %v943 = vpop.f32.mrb[0].mxu0
      %v944 = vpop.f32.mrb[0].mxu0
      %v945 = vadd.f32 %v785, %v944
      %v946 = vpop.f32.mrb[0].mxu0
      %947 = vmatprep.mubr.bf16.mxu0 0
      %948 = vmatmul.mubr.bf16.gmra.mrb[0].mxu0 %v775
      %v949 = vpop.f32.mrb[0].mxu0
      %v950 = vadd.f32 %v785, %v949
      %v951 = vpop.f32.mrb[0].mxu0
      %v952 = vpop.f32.mrb[0].mxu0
      %v953 = vadd.f32 %v785, %v952
      %v954 = vpop.f32.mrb[0].mxu0
      %955 = vmatprep.mubr.bf16.mxu0 0
      %956 = vmatmul.mubr.bf16.gmra.mrb[0].mxu0 %v776
      %v957 = vpop.f32.mrb[0].mxu0
      %v958 = vadd.f32 %v785, %v957
      %v959 = vpop.f32.mrb[0].mxu0
      %v960 = vpop.f32.mrb[0].mxu0
      %v961 = vadd.f32 %v785, %v960
      %v962 = vpop.f32.mrb[0].mxu0
      %963 = vmatprep.mubr.bf16.mxu0 0
      %964 = vmatmul.mubr.bf16.gmra.mrb[0].mxu0 %v777
      %v965 = vpop.f32.mrb[0].mxu0
      %v966 = vadd.f32 %v785, %v965
      %v967 = vpop.f32.mrb[0].mxu0
      %v968 = vpop.f32.mrb[0].mxu0
      %v969 = vadd.f32 %v785, %v968
      %v970 = vpop.f32.mrb[0].mxu0
      %971 = vmatprep.mubr.bf16.mxu0 0
      %972 = vmatmul.mubr.bf16.gmra.mrb[0].mxu0 %v778
      %v973 = vpop.f32.mrb[0].mxu0
      %v974 = vadd.f32 %v785, %v973
      %v975 = vpop.f32.mrb[0].mxu0
      %v976 = vpop.f32.mrb[0].mxu0
      %v977 = vadd.f32 %v785, %v976
      %v978 = vpop.f32.mrb[0].mxu0
      %979 = vmatprep.mubr.bf16.mxu0 0
      %980 = vmatmul.mubr.bf16.gmra.mrb[0].mxu0 %v779
      %v981 = vpop.f32.mrb[0].mxu0
      %v982 = vadd.f32 %v785, %v981
      %v983 = vpop.f32.mrb[0].mxu0
      %v984 = vpop.f32.mrb[0].mxu0
      %v985 = vadd.f32 %v785, %v984
      %v986 = vpop.f32.mrb[0].mxu0
      %987 = vmatprep.mubr.bf16.mxu0 0
      %988 = vmatmul.mubr.bf16.gmra.mrb[0].mxu0 %v780
      %v989 = vpop.f32.mrb[0].mxu0
      %v990 = vadd.f32 %v785, %v989
      %v991 = vpop.f32.mrb[0].mxu0
      %v992 = vpop.f32.mrb[0].mxu0
      %v993 = vadd.f32 %v785, %v992
      %v994 = vpop.f32.mrb[0].mxu0
      %995 = vdwg.mxu0
      %v996 = vsub.f32 0.0, %v870
      %v997 = vsub.f32 0.0, %v873
      %v998 = vsub.f32 0.0, %v878
      %v999 = vsub.f32 0.0, %v881
      %v1000 = vsub.f32 0.0, %v886
      %v1001 = vsub.f32 0.0, %v889
      %v1002 = vsub.f32 0.0, %v894
      %v1003 = vsub.f32 0.0, %v897
      %v1004 = vsub.f32 0.0, %v902
      %v1005 = vsub.f32 0.0, %v905
      %v1006 = vsub.f32 0.0, %v910
      %v1007 = vsub.f32 0.0, %v913
      %v1008 = vsub.f32 0.0, %v918
      %v1009 = vsub.f32 0.0, %v921
      %v1010 = vsub.f32 0.0, %v926
      %v1011 = vsub.f32 0.0, %v929
      %v1012 = vsub.f32 0.0, %v934
      %v1013 = vsub.f32 0.0, %v937
      %v1014 = vsub.f32 0.0, %v942
      %v1015 = vsub.f32 0.0, %v945
      %v1016 = vsub.f32 0.0, %v950
      %v1017 = vsub.f32 0.0, %v953
      %v1018 = vsub.f32 0.0, %v958
      %v1019 = vsub.f32 0.0, %v961
      %v1020 = vsub.f32 0.0, %v966
      %v1021 = vsub.f32 0.0, %v969
      %v1022 = vsub.f32 0.0, %v974
      %v1023 = vsub.f32 0.0, %v977
      %v1024 = vsub.f32 0.0, %v982
      %v1025 = vsub.f32 0.0, %v985
      %v1026 = vsub.f32 0.0, %v990
      %v1027 = vsub.f32 0.0, %v993
      %v1028 = vmul.f32 %v996, 1.442695
      %v1029 = vpow.pop %v1028
      %v1030 = vmul.f32 %v997, 1.442695
      %v1031 = vpow.pop %v1030
      %v1032 = vmul.f32 %v998, 1.442695
      %v1033 = vpow.pop %v1032
      %v1034 = vmul.f32 %v999, 1.442695
      %v1035 = vpow.pop %v1034
      %v1036 = vmul.f32 %v1000, 1.442695
      %v1037 = vpow.pop %v1036
      %v1038 = vmul.f32 %v1001, 1.442695
      %v1039 = vpow.pop %v1038
      %v1040 = vmul.f32 %v1002, 1.442695
      %v1041 = vpow.pop %v1040
      %v1042 = vmul.f32 %v1003, 1.442695
      %v1043 = vpow.pop %v1042
      %v1044 = vmul.f32 %v1004, 1.442695
      %v1045 = vpow.pop %v1044
      %v1046 = vmul.f32 %v1005, 1.442695
      %v1047 = vpow.pop %v1046
      %v1048 = vmul.f32 %v1006, 1.442695
      %v1049 = vpow.pop %v1048
      %v1050 = vmul.f32 %v1007, 1.442695
      %v1051 = vpow.pop %v1050
      %v1052 = vmul.f32 %v1008, 1.442695
      %v1053 = vpow.pop %v1052
      %v1054 = vmul.f32 %v1009, 1.442695
      %v1055 = vpow.pop %v1054
      %v1056 = vmul.f32 %v1010, 1.442695
      %v1057 = vpow.pop %v1056
      %v1058 = vmul.f32 %v1011, 1.442695
      %v1059 = vpow.pop %v1058
      %v1060 = vmul.f32 %v1012, 1.442695
      %v1061 = vpow.pop %v1060
      %v1062 = vmul.f32 %v1013, 1.442695
      %v1063 = vpow.pop %v1062
      %v1064 = vmul.f32 %v1014, 1.442695
      %v1065 = vpow.pop %v1064
      %v1066 = vmul.f32 %v1015, 1.442695
      %v1067 = vpow.pop %v1066
      %v1068 = vmul.f32 %v1016, 1.442695
      %v1069 = vpow.pop %v1068
      %v1070 = vmul.f32 %v1017, 1.442695
      %v1071 = vpow.pop %v1070
      %v1072 = vmul.f32 %v1018, 1.442695
      %v1073 = vpow.pop %v1072
      %v1074 = vmul.f32 %v1019, 1.442695
      %v1075 = vpow.pop %v1074
      %v1076 = vmul.f32 %v1020, 1.442695
      %v1077 = vpow.pop %v1076
      %v1078 = vmul.f32 %v1021, 1.442695
      %v1079 = vpow.pop %v1078
      %v1080 = vmul.f32 %v1022, 1.442695
      %v1081 = vpow.pop %v1080
      %v1082 = vmul.f32 %v1023, 1.442695
      %v1083 = vpow.pop %v1082
      %v1084 = vmul.f32 %v1024, 1.442695
      %v1085 = vpow.pop %v1084
      %v1086 = vmul.f32 %v1025, 1.442695
      %v1087 = vpow.pop %v1086
      %v1088 = vmul.f32 %v1026, 1.442695
      %v1089 = vpow.pop %v1088
      %v1090 = vmul.f32 %v1027, 1.442695
      %v1091 = vpow.pop %v1090
      %v1092 = vadd.f32 %v1029, 1.0
      %v1093 = vadd.f32 %v1031, 1.0
      %v1094 = vadd.f32 %v1033, 1.0
      %v1095 = vadd.f32 %v1035, 1.0
      %v1096 = vadd.f32 %v1037, 1.0
      %v1097 = vadd.f32 %v1039, 1.0
      %v1098 = vadd.f32 %v1041, 1.0
      %v1099 = vadd.f32 %v1043, 1.0
      %v1100 = vadd.f32 %v1045, 1.0
      %v1101 = vadd.f32 %v1047, 1.0
      %v1102 = vadd.f32 %v1049, 1.0
      %v1103 = vadd.f32 %v1051, 1.0
      %v1104 = vadd.f32 %v1053, 1.0
      %v1105 = vadd.f32 %v1055, 1.0
      %v1106 = vadd.f32 %v1057, 1.0
      %v1107 = vadd.f32 %v1059, 1.0
      %v1108 = vadd.f32 %v1061, 1.0
      %v1109 = vadd.f32 %v1063, 1.0
      %v1110 = vadd.f32 %v1065, 1.0
      %v1111 = vadd.f32 %v1067, 1.0
      %v1112 = vadd.f32 %v1069, 1.0
      %v1113 = vadd.f32 %v1071, 1.0
      %v1114 = vadd.f32 %v1073, 1.0
      %v1115 = vadd.f32 %v1075, 1.0
      %v1116 = vadd.f32 %v1077, 1.0
      %v1117 = vadd.f32 %v1079, 1.0
      %v1118 = vadd.f32 %v1081, 1.0
      %v1119 = vadd.f32 %v1083, 1.0
      %v1120 = vadd.f32 %v1085, 1.0
      %v1121 = vadd.f32 %v1087, 1.0
      %v1122 = vadd.f32 %v1089, 1.0
      %v1123 = vadd.f32 %v1091, 1.0
      %v1124 = vrcp.pop %v1092
      %v1125 = vmul.f32 1.0, %v1124
      %v1126 = vrcp.pop %v1093
      %v1127 = vmul.f32 1.0, %v1126
      %v1128 = vrcp.pop %v1094
      %v1129 = vmul.f32 1.0, %v1128
      %v1130 = vrcp.pop %v1095
      %v1131 = vmul.f32 1.0, %v1130
      %v1132 = vrcp.pop %v1096
      %v1133 = vmul.f32 1.0, %v1132
      %v1134 = vrcp.pop %v1097
      %v1135 = vmul.f32 1.0, %v1134
      %v1136 = vrcp.pop %v1098
      %v1137 = vmul.f32 1.0, %v1136
      %v1138 = vrcp.pop %v1099
      %v1139 = vmul.f32 1.0, %v1138
      %v1140 = vrcp.pop %v1100
      %v1141 = vmul.f32 1.0, %v1140
      %v1142 = vrcp.pop %v1101
      %v1143 = vmul.f32 1.0, %v1142
      %v1144 = vrcp.pop %v1102
      %v1145 = vmul.f32 1.0, %v1144
      %v1146 = vrcp.pop %v1103
      %v1147 = vmul.f32 1.0, %v1146
      %v1148 = vrcp.pop %v1104
      %v1149 = vmul.f32 1.0, %v1148
      %v1150 = vrcp.pop %v1105
      %v1151 = vmul.f32 1.0, %v1150
      %v1152 = vrcp.pop %v1106
      %v1153 = vmul.f32 1.0, %v1152
      %v1154 = vrcp.pop %v1107
      %v1155 = vmul.f32 1.0, %v1154
      %v1156 = vrcp.pop %v1108
      %v1157 = vmul.f32 1.0, %v1156
      %v1158 = vrcp.pop %v1109
      %v1159 = vmul.f32 1.0, %v1158
      %v1160 = vrcp.pop %v1110
      %v1161 = vmul.f32 1.0, %v1160
      %v1162 = vrcp.pop %v1111
      %v1163 = vmul.f32 1.0, %v1162
      %v1164 = vrcp.pop %v1112
      %v1165 = vmul.f32 1.0, %v1164
      %v1166 = vrcp.pop %v1113
      %v1167 = vmul.f32 1.0, %v1166
      %v1168 = vrcp.pop %v1114
      %v1169 = vmul.f32 1.0, %v1168
      %v1170 = vrcp.pop %v1115
      %v1171 = vmul.f32 1.0, %v1170
      %v1172 = vrcp.pop %v1116
      %v1173 = vmul.f32 1.0, %v1172
      %v1174 = vrcp.pop %v1117
      %v1175 = vmul.f32 1.0, %v1174
      %v1176 = vrcp.pop %v1118
      %v1177 = vmul.f32 1.0, %v1176
      %v1178 = vrcp.pop %v1119
      %v1179 = vmul.f32 1.0, %v1178
      %v1180 = vrcp.pop %v1120
      %v1181 = vmul.f32 1.0, %v1180
      %v1182 = vrcp.pop %v1121
      %v1183 = vmul.f32 1.0, %v1182
      %v1184 = vrcp.pop %v1122
      %v1185 = vmul.f32 1.0, %v1184
      %v1186 = vrcp.pop %v1123
      %v1187 = vmul.f32 1.0, %v1186
      %v1188 = vld [vmem:[%s5] sm:$0xf]
      %v1189 = vld [vmem:[%s5 + $0x4] sm:$0xf]
      %v1190 = vld [vmem:[%s5 + $0x8] sm:$0xf]
      %v1191 = vld [vmem:[%s5 + $0xc] sm:$0xf]
      %v1192 = vld [vmem:[%s5 + $0x10] sm:$0xf]
      %v1193 = vld [vmem:[%s5 + $0x14] sm:$0xf]
      %v1194 = vld [vmem:[%s5 + $0x18] sm:$0xf]
      %v1195 = vld [vmem:[%s5 + $0x1c] sm:$0xf]
      %v1196 = vld [vmem:[%s5 + $0x20] sm:$0xf]
      %v1197 = vld [vmem:[%s5 + $0x24] sm:$0xf]
      %v1198 = vld [vmem:[%s5 + $0x28] sm:$0xf]
      %v1199 = vld [vmem:[%s5 + $0x2c] sm:$0xf]
      %v1200 = vld [vmem:[%s5 + $0x30] sm:$0xf]
      %v1201 = vld [vmem:[%s5 + $0x34] sm:$0xf]
      %v1202 = vld [vmem:[%s5 + $0x38] sm:$0xf]
      %v1203 = vld [vmem:[%s5 + $0x3c] sm:$0xf]
      %v1204 = vld [vmem:[%s6] sm:$0x1]
      %v1205 = vpack.c.bf16 %v1127, %v1125
      %v1206 = vpack.c.bf16 %v1131, %v1129
      %v1207 = vpack.c.bf16 %v1135, %v1133
      %v1208 = vpack.c.bf16 %v1139, %v1137
      %v1209 = vpack.c.bf16 %v1143, %v1141
      %v1210 = vpack.c.bf16 %v1147, %v1145
      %v1211 = vpack.c.bf16 %v1151, %v1149
      %v1212 = vpack.c.bf16 %v1155, %v1153
      %v1213 = vpack.c.bf16 %v1159, %v1157
      %v1214 = vpack.c.bf16 %v1163, %v1161
      %v1215 = vpack.c.bf16 %v1167, %v1165
      %v1216 = vpack.c.bf16 %v1171, %v1169
      %v1217 = vpack.c.bf16 %v1175, %v1173
      %v1218 = vpack.c.bf16 %v1179, %v1177
      %v1219 = vpack.c.bf16 %v1183, %v1181
      %v1220 = vpack.c.bf16 %v1187, %v1185
      %v1222 = vlaneseq
      %v1223 = vshrl.u32 %v1222, 7
      %v1224 = vsub.s32 0, %v1223
      %v1225 = vrot.slane %v1204, %v1224
      %v1243 = vunpack.c.l.b16 %v1188
      %v1244 = vunpack.c.l.b16 %v1189
      %v1245 = vunpack.c.l.b16 %v1190
      %v1246 = vunpack.c.l.b16 %v1191
      %v1247 = vunpack.c.l.b16 %v1192
      %v1248 = vunpack.c.l.b16 %v1193
      %v1249 = vunpack.c.l.b16 %v1194
      %v1250 = vunpack.c.l.b16 %v1195
      %v1251 = vunpack.c.l.b16 %v1196
      %v1252 = vunpack.c.l.b16 %v1197
      %v1253 = vunpack.c.l.b16 %v1198
      %v1254 = vunpack.c.l.b16 %v1199
      %v1255 = vunpack.c.l.b16 %v1200
      %v1256 = vunpack.c.l.b16 %v1201
      %v1257 = vunpack.c.l.b16 %v1202
      %v1258 = vunpack.c.l.b16 %v1203
      %v1259 = vpack.c.b16 %v1244, %v1243
      %v1260 = vpack.c.b16 %v1246, %v1245
      %v1261 = vpack.c.b16 %v1248, %v1247
      %v1262 = vpack.c.b16 %v1250, %v1249
      %v1263 = vpack.c.b16 %v1252, %v1251
      %v1264 = vpack.c.b16 %v1254, %v1253
      %v1265 = vpack.c.b16 %v1256, %v1255
      %v1266 = vpack.c.b16 %v1258, %v1257
      %1275 = vmatprep.subr.bf16.mxu0 0
      %1276 = vmatpush1.bf16.msra.mxu0 %v1259
      %1277 = vmatprep.subr.bf16.mxu0 0
      %1278 = vmatpush1.bf16.msra.mxu0 %v1260
      %1279 = vmatprep.subr.bf16.mxu0 0
      %1280 = vmatpush1.bf16.msra.mxu0 %v1261
      %1281 = vmatprep.subr.bf16.mxu0 0
      %1282 = vmatpush1.bf16.msra.mxu0 %v1262
      %1283 = vmatprep.subr.bf16.mxu0 0
      %1284 = vmatpush1.bf16.msra.mxu0 %v1263
      %1285 = vmatprep.subr.bf16.mxu0 0
      %1286 = vmatpush1.bf16.msra.mxu0 %v1264
      %1287 = vmatprep.subr.bf16.mxu0 0
      %1288 = vmatpush1.bf16.msra.mxu0 %v1265
      %1289 = vmatprep.subr.bf16.mxu0 0
      %1290 = vmatpush1.bf16.msra.mxu0 %v1266
      %1291 = vmatprep.subr.bf16.mxu0 0
      %1292 = vmatpush1.bf16.msra.mxu0 0
      %1293 = vmatprep.subr.bf16.mxu0 0
      %1294 = vmatpush1.bf16.msra.mxu0 0
      %1295 = vmatprep.subr.bf16.mxu0 0
      %1296 = vmatpush1.bf16.msra.mxu0 0
      %1297 = vmatprep.subr.bf16.mxu0 0
      %1298 = vmatpush1.bf16.msra.mxu0 0
      %1299 = vmatprep.subr.bf16.mxu0 0
      %1300 = vmatpush1.bf16.msra.mxu0 0
      %1301 = vmatprep.subr.bf16.mxu0 0
      %1302 = vmatpush1.bf16.msra.mxu0 0
      %1303 = vmatprep.subr.bf16.mxu0 0
      %1304 = vmatpush1.bf16.msra.mxu0 0
      %1305 = vmatprep.subr.bf16.mxu0 0
      %1306 = vmatpush1.bf16.msra.mxu0 0
      %1307 = vmatprep.mubr.bf16.mxu0 0
      %1308 = vmatmul.mubr.bf16.gmra.mrb[0].mxu0 %v1205
      %v1309 = vpop.f32.mrb[0].mxu0
      %v1310 = vadd.f32 %v1225, %v1309
      %v1311 = vpop.f32.mrb[0].mxu0
      %v1312 = vpop.f32.mrb[0].mxu0
      %v1313 = vadd.f32 %v1225, %v1312
      %v1314 = vpop.f32.mrb[0].mxu0
      %1315 = vmatprep.mubr.bf16.mxu0 0
      %1316 = vmatmul.mubr.bf16.gmra.mrb[0].mxu0 %v1206
      %v1317 = vpop.f32.mrb[0].mxu0
      %v1318 = vadd.f32 %v1225, %v1317
      %v1319 = vpop.f32.mrb[0].mxu0
      %v1320 = vpop.f32.mrb[0].mxu0
      %v1321 = vadd.f32 %v1225, %v1320
      %v1322 = vpop.f32.mrb[0].mxu0
      %1323 = vmatprep.mubr.bf16.mxu0 0
      %1324 = vmatmul.mubr.bf16.gmra.mrb[0].mxu0 %v1207
      %v1325 = vpop.f32.mrb[0].mxu0
      %v1326 = vadd.f32 %v1225, %v1325
      %v1327 = vpop.f32.mrb[0].mxu0
      %v1328 = vpop.f32.mrb[0].mxu0
      %v1329 = vadd.f32 %v1225, %v1328
      %v1330 = vpop.f32.mrb[0].mxu0
      %1331 = vmatprep.mubr.bf16.mxu0 0
      %1332 = vmatmul.mubr.bf16.gmra.mrb[0].mxu0 %v1208
      %v1333 = vpop.f32.mrb[0].mxu0
      %v1334 = vadd.f32 %v1225, %v1333
      %v1335 = vpop.f32.mrb[0].mxu0
      %v1336 = vpop.f32.mrb[0].mxu0
      %v1337 = vadd.f32 %v1225, %v1336
      %v1338 = vpop.f32.mrb[0].mxu0
      %1339 = vmatprep.mubr.bf16.mxu0 0
      %1340 = vmatmul.mubr.bf16.gmra.mrb[0].mxu0 %v1209
      %v1341 = vpop.f32.mrb[0].mxu0
      %v1342 = vadd.f32 %v1225, %v1341
      %v1343 = vpop.f32.mrb[0].mxu0
      %v1344 = vpop.f32.mrb[0].mxu0
      %v1345 = vadd.f32 %v1225, %v1344
      %v1346 = vpop.f32.mrb[0].mxu0
      %1347 = vmatprep.mubr.bf16.mxu0 0
      %1348 = vmatmul.mubr.bf16.gmra.mrb[0].mxu0 %v1210
      %v1349 = vpop.f32.mrb[0].mxu0
      %v1350 = vadd.f32 %v1225, %v1349
      %v1351 = vpop.f32.mrb[0].mxu0
      %v1352 = vpop.f32.mrb[0].mxu0
      %v1353 = vadd.f32 %v1225, %v1352
      %v1354 = vpop.f32.mrb[0].mxu0
      %1355 = vmatprep.mubr.bf16.mxu0 0
      %1356 = vmatmul.mubr.bf16.gmra.mrb[0].mxu0 %v1211
      %v1357 = vpop.f32.mrb[0].mxu0
      %v1358 = vadd.f32 %v1225, %v1357
      %v1359 = vpop.f32.mrb[0].mxu0
      %v1360 = vpop.f32.mrb[0].mxu0
      %v1361 = vadd.f32 %v1225, %v1360
      %v1362 = vpop.f32.mrb[0].mxu0
      %1363 = vmatprep.mubr.bf16.mxu0 0
      %1364 = vmatmul.mubr.bf16.gmra.mrb[0].mxu0 %v1212
      %v1365 = vpop.f32.mrb[0].mxu0
      %v1366 = vadd.f32 %v1225, %v1365
      %v1367 = vpop.f32.mrb[0].mxu0
      %v1368 = vpop.f32.mrb[0].mxu0
      %v1369 = vadd.f32 %v1225, %v1368
      %v1370 = vpop.f32.mrb[0].mxu0
      %1371 = vmatprep.mubr.bf16.mxu0 0
      %1372 = vmatmul.mubr.bf16.gmra.mrb[0].mxu0 %v1213
      %v1373 = vpop.f32.mrb[0].mxu0
      %v1374 = vadd.f32 %v1225, %v1373
      %v1375 = vpop.f32.mrb[0].mxu0
      %v1376 = vpop.f32.mrb[0].mxu0
      %v1377 = vadd.f32 %v1225, %v1376
      %v1378 = vpop.f32.mrb[0].mxu0
      %1379 = vmatprep.mubr.bf16.mxu0 0
      %1380 = vmatmul.mubr.bf16.gmra.mrb[0].mxu0 %v1214
      %v1381 = vpop.f32.mrb[0].mxu0
      %v1382 = vadd.f32 %v1225, %v1381
      %v1383 = vpop.f32.mrb[0].mxu0
      %v1384 = vpop.f32.mrb[0].mxu0
      %v1385 = vadd.f32 %v1225, %v1384
      %v1386 = vpop.f32.mrb[0].mxu0
      %1387 = vmatprep.mubr.bf16.mxu0 0
      %1388 = vmatmul.mubr.bf16.gmra.mrb[0].mxu0 %v1215
      %v1389 = vpop.f32.mrb[0].mxu0
      %v1390 = vadd.f32 %v1225, %v1389
      %v1391 = vpop.f32.mrb[0].mxu0
      %v1392 = vpop.f32.mrb[0].mxu0
      %v1393 = vadd.f32 %v1225, %v1392
      %v1394 = vpop.f32.mrb[0].mxu0
      %1395 = vmatprep.mubr.bf16.mxu0 0
      %1396 = vmatmul.mubr.bf16.gmra.mrb[0].mxu0 %v1216
      %v1397 = vpop.f32.mrb[0].mxu0
      %v1398 = vadd.f32 %v1225, %v1397
      %v1399 = vpop.f32.mrb[0].mxu0
      %v1400 = vpop.f32.mrb[0].mxu0
      %v1401 = vadd.f32 %v1225, %v1400
      %v1402 = vpop.f32.mrb[0].mxu0
      %1403 = vmatprep.mubr.bf16.mxu0 0
      %1404 = vmatmul.mubr.bf16.gmra.mrb[0].mxu0 %v1217
      %v1405 = vpop.f32.mrb[0].mxu0
      %v1406 = vadd.f32 %v1225, %v1405
      %v1407 = vpop.f32.mrb[0].mxu0
      %v1408 = vpop.f32.mrb[0].mxu0
      %v1409 = vadd.f32 %v1225, %v1408
      %v1410 = vpop.f32.mrb[0].mxu0
      %1411 = vmatprep.mubr.bf16.mxu0 0
      %1412 = vmatmul.mubr.bf16.gmra.mrb[0].mxu0 %v1218
      %v1413 = vpop.f32.mrb[0].mxu0
      %v1414 = vadd.f32 %v1225, %v1413
      %v1415 = vpop.f32.mrb[0].mxu0
      %v1416 = vpop.f32.mrb[0].mxu0
      %v1417 = vadd.f32 %v1225, %v1416
      %v1418 = vpop.f32.mrb[0].mxu0
      %1419 = vmatprep.mubr.bf16.mxu0 0
      %1420 = vmatmul.mubr.bf16.gmra.mrb[0].mxu0 %v1219
      %v1421 = vpop.f32.mrb[0].mxu0
      %v1422 = vadd.f32 %v1225, %v1421
      %v1423 = vpop.f32.mrb[0].mxu0
      %v1424 = vpop.f32.mrb[0].mxu0
      %v1425 = vadd.f32 %v1225, %v1424
      %v1426 = vpop.f32.mrb[0].mxu0
      %1427 = vmatprep.mubr.bf16.mxu0 0
      %1428 = vmatmul.mubr.bf16.gmra.mrb[0].mxu0 %v1220
      %v1429 = vpop.f32.mrb[0].mxu0
      %v1430 = vadd.f32 %v1225, %v1429
      %v1431 = vpop.f32.mrb[0].mxu0
      %v1432 = vpop.f32.mrb[0].mxu0
      %v1433 = vadd.f32 %v1225, %v1432
      %v1434 = vpop.f32.mrb[0].mxu0
      %1435 = vdwg.mxu0
      %1436 = vst [vmem:[%s280] sm:$0xff] %v1310
      %1437 = vst [vmem:[%s280 + $0x8] sm:$0xff] %v1313
      %1438 = vst [vmem:[%s280 + $0x10] sm:$0xff] %v1318
      %1439 = vst [vmem:[%s280 + $0x18] sm:$0xff] %v1321
      %1440 = vst [vmem:[%s280 + $0x20] sm:$0xff] %v1326
      %1441 = vst [vmem:[%s280 + $0x28] sm:$0xff] %v1329
      %1442 = vst [vmem:[%s280 + $0x30] sm:$0xff] %v1334
      %1443 = vst [vmem:[%s280 + $0x38] sm:$0xff] %v1337
      %1444 = vst [vmem:[%s280 + $0x40] sm:$0xff] %v1342
      %1445 = vst [vmem:[%s280 + $0x48] sm:$0xff] %v1345
      %1446 = vst [vmem:[%s280 + $0x50] sm:$0xff] %v1350
      %1447 = vst [vmem:[%s280 + $0x58] sm:$0xff] %v1353
      %1448 = vst [vmem:[%s280 + $0x60] sm:$0xff] %v1358
      %1449 = vst [vmem:[%s280 + $0x68] sm:$0xff] %v1361
      %1450 = vst [vmem:[%s280 + $0x70] sm:$0xff] %v1366
      %1451 = vst [vmem:[%s280 + $0x78] sm:$0xff] %v1369
      %1452 = vst [vmem:[%s280 + $0x80] sm:$0xff] %v1374
      %1453 = vst [vmem:[%s280 + $0x88] sm:$0xff] %v1377
      %1454 = vst [vmem:[%s280 + $0x90] sm:$0xff] %v1382
      %1455 = vst [vmem:[%s280 + $0x98] sm:$0xff] %v1385
      %1456 = vst [vmem:[%s280 + $0xa0] sm:$0xff] %v1390
      %1457 = vst [vmem:[%s280 + $0xa8] sm:$0xff] %v1393
      %1458 = vst [vmem:[%s280 + $0xb0] sm:$0xff] %v1398
      %1459 = vst [vmem:[%s280 + $0xb8] sm:$0xff] %v1401
      %1460 = vst [vmem:[%s280 + $0xc0] sm:$0xff] %v1406
      %1461 = vst [vmem:[%s280 + $0xc8] sm:$0xff] %v1409
      %1462 = vst [vmem:[%s280 + $0xd0] sm:$0xff] %v1414
      %1463 = vst [vmem:[%s280 + $0xd8] sm:$0xff] %v1417
      %1464 = vst [vmem:[%s280 + $0xe0] sm:$0xff] %v1422
      %1465 = vst [vmem:[%s280 + $0xe8] sm:$0xff] %v1425
      %1466 = vst [vmem:[%s280 + $0xf0] sm:$0xff] %v1430
      %1467 = vst [vmem:[%s280 + $0xf8] sm:$0xff] %v1433
      %s1468 = smul.u32 32, %s18
      %p1469 = scmp.lt.s32.totalorder %s1468, 63
      %s1470 = scalar_select %p1469, %s1468, 63
      %s1471 = smul.addr %s1470, 8
      %s1472 = scalar_lea.vmem %s7, %s1471
      // Predicated region
      $region49: #{_mlp_forward.1} parent=47 // pred_check
        %p1473 = pneg %p188
      $region50: #{_mlp_forward.1} parent=47 // pred_check_branch
        %1475 = sbr.rel (%p1473) target = $region52
      $region51: #{_mlp_forward.1} parent=47 // pred_region
        %s1476 = smul.u32 32, %s18
      $region52: #{_mlp_forward.1} parent=47 // pred_fallthru
        _
    $region48: #{_mlp_forward.1} parent=5 // pred_fallthru
      _
    %p1477 = scmp.le.s32.totalorder 2, %s13
    // Predicated region
    $region53: #{_mlp_forward.1} parent=5 // pred_check
      %p1478 = pneg %p1477
    $region54: #{_mlp_forward.1} parent=5 // pred_check_branch
      %1480 = sbr.rel (%p1478) target = $region56
    $region55: #{_mlp_forward.1} parent=5 // pred_region
      %s1481 = ssub.s32 %s13, 2
      // Predicated region
      $region57: #{_mlp_forward.1} parent=55 // pred_check
        %p1482 = pneg %p194
      $region58: #{_mlp_forward.1} parent=55 // pred_check_branch
        %1484 = sbr.rel (%p1482) target = $region60
      $region59: #{_mlp_forward.1} parent=55 // pred_region
        %s1485 = smul.u32 32, %s19
        %p1486 = scmp.lt.s32.totalorder %s1485, 63
        %s1487 = scalar_select %p1486, %s1485, 63
        %s1488 = smul.addr %s1487, 8
        %s1489 = scalar_lea.vmem %s7, %s1488
      $region60: #{_mlp_forward.1} parent=55 // pred_fallthru
        _
    $region56: #{_mlp_forward.1} parent=5 // pred_fallthru
      _
  $region6: #{_mlp_forward.1} parent=0 // loop_footer
    %s17 = sadd.s32 1, %s13
  $region7: #{_mlp_forward.1} parent=0 // loop_footer_branch
    %12 = sbr.rel target = $region3
  $region8: #{_mlp_forward.1} parent=0 // loop_exit
    _

</llo_original>
